<compile_context>
chip_gen: v5e
topology: v5e:2x2
jax: 0.10.0
libtpu: 0.0.40
codegen_flags: <defaults>
</compile_context>

<pallas_src>
import jax
import jax.numpy as jnp
from jax.experimental import pallas as pl
from jax.experimental.pallas import tpu as pltpu  # noqa: F401  (TPU backend)

# --- small, module-consistent dimensions (scaled down from 384/6/256) ---
N_EMBD = 48          # n_embd (divisible by n_head)
N_HEAD = 6           # n_head
HEAD_SIZE = N_EMBD // N_HEAD
BATCH = 2
SEQ = 8              # T <= block_size
LN_EPS = 1e-5


def _layernorm(h, gamma, beta):
    mu = jnp.mean(h, axis=-1, keepdims=True)
    var = jnp.mean((h - mu) ** 2, axis=-1, keepdims=True)
    return (h - mu) * jax.lax.rsqrt(var + LN_EPS) * gamma + beta


def block_kernel(x_ref, pk_ref, wqkv_ref, wp3_ref, w1_ref, w2_ref, o_ref):
    # Single grid-less invocation: the whole problem (~110 KB) fits VMEM.
    x = x_ref[...]                                   # (BT, C) float32
    BT, C = x.shape
    H = N_HEAD
    hs = C // H
    H4 = w1_ref.shape[1]
    scale = C ** (-0.5)                              # reference uses n_embd ** -0.5

    # Packed small constants: rows 0..6 = g1,b1,g2,b2,bp,bf1,bf2; rows 8..8+BT
    # hold the additive block-diagonal causal mask (one DMA instead of eight).
    pk = pk_ref[...]
    g1 = pk[0:1, 0:C]
    b1 = pk[1:2, 0:C]
    g2 = pk[2:3, 0:C]
    b2 = pk[3:4, 0:C]
    bp = pk[4:5, 0:C]
    bf1 = pk[5:6, 0:H4]
    bf2 = pk[6:7, 0:C]
    neg = pk[8:8 + BT, 0:BT]                         # (BT, BT) additive mask

    # ---- self-attention branch ----
    h = _layernorm(x, g1, b1)                        # (BT, C)

    # One fused QKV matmul.  Columns [0:C)=Q, [C:2C)=K, [2C:3C)=V; within each,
    # head hd occupies lanes hd*hs : (hd+1)*hs.
    qkv = jnp.dot(h, wqkv_ref[...], preferred_element_type=jnp.float32)   # (BT, 3C)

    # Head-batched Q/K/V slabs: (H, BT, hs).  Score scale applied to Q only.
    q = jnp.stack([qkv[:, hd * hs:(hd + 1) * hs] for hd in range(H)], axis=0) * scale
    k = jnp.stack([qkv[:, C + hd * hs:C + (hd + 1) * hs] for hd in range(H)], axis=0)
    v = jnp.stack([qkv[:, 2 * C + hd * hs:2 * C + (hd + 1) * hs] for hd in range(H)], axis=0)

    # Batched scores over all heads at once (canonical contraction, no vxpose
    # on K).  Batch is folded into the sequence axis; the additive mask is
    # block-diagonal causal so cross-batch keys get -1e30 (exp -> 0, exact).
    s = jnp.einsum('hqd,hkd->hqk', q, k, preferred_element_type=jnp.float32)  # (H, BT, BT)
    s = s + neg[None, :, :]

    # One softmax over the whole (H, BT, BT) tensor; exact reciprocal.
    m = jnp.max(s, axis=-1, keepdims=True)
    p = jnp.exp(s - m)
    p = p * pl.reciprocal(jnp.sum(p, axis=-1, keepdims=True), approx=False)

    # Batched P @ V, then per-head projection (batched matmul + head-sum) —
    # no concatenation of head outputs.
    o = jnp.einsum('hqk,hkd->hqd', p, v, preferred_element_type=jnp.float32)       # (H, BT, hs)
    sa = jnp.einsum('hqd,hdc->hqc', o, wp3_ref[...],
                    preferred_element_type=jnp.float32)                            # (H, BT, C)
    sa = jnp.sum(sa, axis=0) + bp                                                  # (BT, C)
    x1 = x + sa                                                                    # residual 1

    # ---- feed-forward branch ----
    h2 = _layernorm(x1, g2, b2)
    ff = jnp.dot(h2, w1_ref[...], preferred_element_type=jnp.float32) + bf1
    ff = jnp.maximum(ff, 0.0)                                                      # ReLU
    ff = jnp.dot(ff, w2_ref[...], preferred_element_type=jnp.float32) + bf2

    y = x1 + ff                                                                    # (BT, C)

    # Lane-dense store: pad to the 128-lane output slab (unmasked vst); the
    # wrapper slices the first C lanes back out.
    pad = o_ref.shape[1] - C
    if pad > 0:
        y = jnp.concatenate([y, jnp.zeros((BT, pad), jnp.float32)], axis=-1)
    o_ref[...] = y.astype(o_ref.dtype)


def transformer_block(x, params):
    (g1, b1, g2, b2, wq, wk, wv, wp, bp, w1, bf1, w2, bf2) = params
    B, T, C = x.shape
    H = N_HEAD
    hs = C // H
    H4 = w1.shape[1]
    BT = B * T

    # Fuse the three attention projections into one (C, 3C) weight; reshape the
    # output projection to per-head (H, hs, C) form (wrapper-side, one-time).
    wqkv = jnp.concatenate([wq, wk, wv], axis=1)              # (C, 3C)
    wp3 = wp.reshape(H, hs, C)                                # (H, hs, C)

    # Pack the seven 1-row params + the (BT, BT) additive block-diagonal causal
    # mask into a single constants buffer (cuts the input DMA count).
    lanes = max(H4, BT)

    def _row(v):
        v = jnp.asarray(v, jnp.float32).reshape(1, -1)
        return jnp.pad(v, ((0, 0), (0, lanes - v.shape[1])))

    r = jnp.arange(BT)[:, None]
    c = jnp.arange(BT)[None, :]
    ok = (r // T == c // T) & (c <= r)                        # same batch AND causal
    neg = jnp.where(ok, 0.0, -1e30).astype(jnp.float32)      # (BT, BT)

    pk = jnp.concatenate(
        [_row(g1), _row(b1), _row(g2), _row(b2), _row(bp), _row(bf1), _row(bf2),
         jnp.zeros((1, lanes), jnp.float32),                  # alignment filler row
         jnp.pad(neg, ((0, 0), (0, lanes - BT)))],
        axis=0)                                               # (8 + BT, lanes)

    # Fold batch into the sublane axis; one grid-less invocation (everything
    # fits VMEM with large margin, so a grid would be pure overhead here).
    x2d = x.reshape(BT, C)
    out_lanes = ((C + 127) // 128) * 128                      # lane-dense output slab
    out2d = pl.pallas_call(
        block_kernel,
        out_shape=jax.ShapeDtypeStruct((BT, out_lanes), x.dtype),
    )(x2d, pk, wqkv, wp3, w1, w2)
    return out2d[:, :C].reshape(B, T, C)


# ---------------- pure-JAX reference (mirrors the PyTorch forward) ----------------
def reference_block(x, params):
    (g1, b1, g2, b2, wq, wk, wv, wp, bp, w1, bf1, w2, bf2) = params
    B, T, C = x.shape

    def ln(h, g, b):
        mu = h.mean(-1, keepdims=True)
        var = ((h - mu) ** 2).mean(-1, keepdims=True)
        return (h - mu) / jnp.sqrt(var + LN_EPS) * g + b

    h = ln(x, g1, b1)
    tril = jnp.tril(jnp.ones((T, T)))
    outs = []
    for hd in range(N_HEAD):
        sl = slice(hd * HEAD_SIZE, (hd + 1) * HEAD_SIZE)
        q = h @ wq[:, sl]
        k = h @ wk[:, sl]
        v = h @ wv[:, sl]
        wei = jnp.einsum('btd,bsd->bts', q, k) * C ** (-0.5)
        wei = jnp.where(tril == 0, -jnp.inf, wei)
        wei = jax.nn.softmax(wei, axis=-1)
        outs.append(jnp.einsum('bts,bsd->btd', wei, v))
    sa = jnp.concatenate(outs, axis=-1) @ wp + bp
    x1 = x + sa
    h2 = ln(x1, g2, b2)
    ff = jnp.maximum(h2 @ w1 + bf1, 0.0) @ w2 + bf2
    return x1 + ff


def make_params(key, C):
    H4 = 4 * C
    ks = jax.random.split(key, 13)
    s = 0.05
    g1 = 1.0 + s * jax.random.normal(ks[9], (1, C), jnp.float32)
    b1 = s * jax.random.normal(ks[10], (1, C), jnp.float32)
    g2 = 1.0 + s * jax.random.normal(ks[11], (1, C), jnp.float32)
    b2 = s * jax.random.normal(ks[12], (1, C), jnp.float32)
    wq = s * jax.random.normal(ks[0], (C, C), jnp.float32)
    wk = s * jax.random.normal(ks[1], (C, C), jnp.float32)
    wv = s * jax.random.normal(ks[2], (C, C), jnp.float32)
    wp = s * jax.random.normal(ks[3], (C, C), jnp.float32)
    bp = s * jax.random.normal(ks[4], (1, C), jnp.float32)
    w1 = s * jax.random.normal(ks[5], (C, H4), jnp.float32)
    bf1 = s * jax.random.normal(ks[6], (1, H4), jnp.float32)
    w2 = s * jax.random.normal(ks[7], (H4, C), jnp.float32)
    bf2 = s * jax.random.normal(ks[8], (1, C), jnp.float32)
    return (g1, b1, g2, b2, wq, wk, wv, wp, bp, w1, bf1, w2, bf2)


if __name__ == "__main__":
    key = jax.random.PRNGKey(0)
    kx, kp = jax.random.split(key)
    x = jax.random.normal(kx, (BATCH, SEQ, N_EMBD), jnp.float32)
    params = make_params(kp, N_EMBD)

    out = jax.block_until_ready(transformer_block(x, params))
    ref = jax.block_until_ready(reference_block(x, params))

    assert out.shape == (BATCH, SEQ, N_EMBD)
    err = float(jnp.max(jnp.abs(out - ref)))
    # exact softmax reciprocal -> only matmul-ordering level differences remain
    assert jnp.allclose(out, ref, rtol=1e-4, atol=1e-4), f"max abs err = {err}"
    print("KERNEL_OK")
</pallas_src>

<mosaic_0001>
module attributes {stable_mosaic.version = 11 : i64} {
  func.func @block_kernel(%arg0: memref<16x48xf32, #tpu.memory_space<vmem>>, %arg1: memref<24x192xf32, #tpu.memory_space<vmem>>, %arg2: memref<48x144xf32, #tpu.memory_space<vmem>>, %arg3: memref<6x8x48xf32, #tpu.memory_space<vmem>>, %arg4: memref<48x192xf32, #tpu.memory_space<vmem>>, %arg5: memref<192x48xf32, #tpu.memory_space<vmem>>, %arg6: memref<16x128xf32, #tpu.memory_space<vmem>>) attributes {dimension_semantics = [], scalar_prefetch = 0 : i64, scratch_operands = 0 : i64, tpu.core_type = #tpu.core_type<tc>} {
    %c0 = arith.constant 0 : index
    %c0_0 = arith.constant 0 : index
    %0 = vector.load %arg0[%c0, %c0_0] : memref<16x48xf32, #tpu.memory_space<vmem>>, vector<16x48xf32>
    %c0_1 = arith.constant 0 : index
    %c0_2 = arith.constant 0 : index
    %1 = vector.load %arg1[%c0_1, %c0_2] : memref<24x192xf32, #tpu.memory_space<vmem>>, vector<24x192xf32>
    %2 = vector.extract_strided_slice %1 {offsets = [0, 0], sizes = [1, 48], strides = [1, 1]} : vector<24x192xf32> to vector<1x48xf32>
    %3 = vector.extract_strided_slice %1 {offsets = [1, 0], sizes = [1, 48], strides = [1, 1]} : vector<24x192xf32> to vector<1x48xf32>
    %4 = vector.extract_strided_slice %1 {offsets = [2, 0], sizes = [1, 48], strides = [1, 1]} : vector<24x192xf32> to vector<1x48xf32>
    %5 = vector.extract_strided_slice %1 {offsets = [3, 0], sizes = [1, 48], strides = [1, 1]} : vector<24x192xf32> to vector<1x48xf32>
    %6 = vector.extract_strided_slice %1 {offsets = [4, 0], sizes = [1, 48], strides = [1, 1]} : vector<24x192xf32> to vector<1x48xf32>
    %7 = vector.extract_strided_slice %1 {offsets = [5, 0], sizes = [1, 192], strides = [1, 1]} : vector<24x192xf32> to vector<1x192xf32>
    %8 = vector.extract_strided_slice %1 {offsets = [6, 0], sizes = [1, 48], strides = [1, 1]} : vector<24x192xf32> to vector<1x48xf32>
    %9 = vector.extract_strided_slice %1 {offsets = [8, 0], sizes = [16, 16], strides = [1, 1]} : vector<24x192xf32> to vector<16x16xf32>
    %cst = arith.constant dense<0.000000e+00> : vector<16xf32>
    %10 = vector.multi_reduction <add>, %0, %cst [1] : vector<16x48xf32> to vector<16xf32>
    %11 = vector.shape_cast %10 : vector<16xf32> to vector<16x1xf32>
    %cst_3 = arith.constant 4.800000e+01 : f32
    %12 = vector.broadcast %cst_3 : f32 to vector<16x1xf32>
    %13 = arith.divf %11, %12 : vector<16x1xf32>
    %14 = vector.broadcast %13 : vector<16x1xf32> to vector<16x48xf32>
    %15 = arith.subf %0, %14 : vector<16x48xf32>
    %16 = arith.mulf %15, %15 : vector<16x48xf32>
    %cst_4 = arith.constant dense<0.000000e+00> : vector<16xf32>
    %17 = vector.multi_reduction <add>, %16, %cst_4 [1] : vector<16x48xf32> to vector<16xf32>
    %18 = vector.shape_cast %17 : vector<16xf32> to vector<16x1xf32>
    %cst_5 = arith.constant 4.800000e+01 : f32
    %19 = vector.broadcast %cst_5 : f32 to vector<16x1xf32>
    %20 = arith.divf %18, %19 : vector<16x1xf32>
    %21 = vector.broadcast %13 : vector<16x1xf32> to vector<16x48xf32>
    %22 = arith.subf %0, %21 : vector<16x48xf32>
    %cst_6 = arith.constant 9.99999974E-6 : f32
    %23 = vector.broadcast %cst_6 : f32 to vector<16x1xf32>
    %24 = arith.addf %20, %23 : vector<16x1xf32>
    %25 = math.rsqrt %24 : vector<16x1xf32>
    %26 = vector.broadcast %25 : vector<16x1xf32> to vector<16x48xf32>
    %27 = arith.mulf %22, %26 : vector<16x48xf32>
    %28 = vector.broadcast %2 : vector<1x48xf32> to vector<16x48xf32>
    %29 = arith.mulf %27, %28 : vector<16x48xf32>
    %30 = vector.broadcast %3 : vector<1x48xf32> to vector<16x48xf32>
    %31 = arith.addf %29, %30 : vector<16x48xf32>
    %c0_7 = arith.constant 0 : index
    %c0_8 = arith.constant 0 : index
    %32 = vector.load %arg2[%c0_7, %c0_8] : memref<48x144xf32, #tpu.memory_space<vmem>>, vector<48x144xf32>
    %cst_9 = arith.constant dense<0.000000e+00> : vector<16x144xf32>
    %33 = tpu.matmul %31, %32, %cst_9 {dimension_numbers = #tpu.dot_dimension_numbers<[1], [0], [0], [1], [0, 0, 1, 1], [], []>} : vector<16x48xf32>, vector<48x144xf32>, vector<16x144xf32> -> vector<16x144xf32>
    %34 = vector.extract_strided_slice %33 {offsets = [0, 0], sizes = [16, 8], strides = [1, 1]} : vector<16x144xf32> to vector<16x8xf32>
    %35 = vector.extract_strided_slice %33 {offsets = [0, 8], sizes = [16, 8], strides = [1, 1]} : vector<16x144xf32> to vector<16x8xf32>
    %36 = vector.extract_strided_slice %33 {offsets = [0, 16], sizes = [16, 8], strides = [1, 1]} : vector<16x144xf32> to vector<16x8xf32>
    %37 = vector.extract_strided_slice %33 {offsets = [0, 24], sizes = [16, 8], strides = [1, 1]} : vector<16x144xf32> to vector<16x8xf32>
    %38 = vector.extract_strided_slice %33 {offsets = [0, 32], sizes = [16, 8], strides = [1, 1]} : vector<16x144xf32> to vector<16x8xf32>
    %39 = vector.extract_strided_slice %33 {offsets = [0, 40], sizes = [16, 8], strides = [1, 1]} : vector<16x144xf32> to vector<16x8xf32>
    %40 = vector.shape_cast %34 : vector<16x8xf32> to vector<1x16x8xf32>
    %41 = vector.shape_cast %35 : vector<16x8xf32> to vector<1x16x8xf32>
    %42 = vector.shape_cast %36 : vector<16x8xf32> to vector<1x16x8xf32>
    %43 = vector.shape_cast %37 : vector<16x8xf32> to vector<1x16x8xf32>
    %44 = vector.shape_cast %38 : vector<16x8xf32> to vector<1x16x8xf32>
    %45 = vector.shape_cast %39 : vector<16x8xf32> to vector<1x16x8xf32>
    %46 = tpu.concatenate %40, %41, %42, %43, %44, %45 in 0 : vector<1x16x8xf32>, vector<1x16x8xf32>, vector<1x16x8xf32>, vector<1x16x8xf32>, vector<1x16x8xf32>, vector<1x16x8xf32> -> vector<6x16x8xf32>
    %cst_10 = arith.constant 0.144337565 : f32
    %47 = vector.broadcast %cst_10 : f32 to vector<6x16x8xf32>
    %48 = arith.mulf %46, %47 : vector<6x16x8xf32>
    %49 = vector.extract_strided_slice %33 {offsets = [0, 48], sizes = [16, 8], strides = [1, 1]} : vector<16x144xf32> to vector<16x8xf32>
    %50 = vector.extract_strided_slice %33 {offsets = [0, 56], sizes = [16, 8], strides = [1, 1]} : vector<16x144xf32> to vector<16x8xf32>
    %51 = vector.extract_strided_slice %33 {offsets = [0, 64], sizes = [16, 8], strides = [1, 1]} : vector<16x144xf32> to vector<16x8xf32>
    %52 = vector.extract_strided_slice %33 {offsets = [0, 72], sizes = [16, 8], strides = [1, 1]} : vector<16x144xf32> to vector<16x8xf32>
    %53 = vector.extract_strided_slice %33 {offsets = [0, 80], sizes = [16, 8], strides = [1, 1]} : vector<16x144xf32> to vector<16x8xf32>
    %54 = vector.extract_strided_slice %33 {offsets = [0, 88], sizes = [16, 8], strides = [1, 1]} : vector<16x144xf32> to vector<16x8xf32>
    %55 = vector.shape_cast %49 : vector<16x8xf32> to vector<1x16x8xf32>
    %56 = vector.shape_cast %50 : vector<16x8xf32> to vector<1x16x8xf32>
    %57 = vector.shape_cast %51 : vector<16x8xf32> to vector<1x16x8xf32>
    %58 = vector.shape_cast %52 : vector<16x8xf32> to vector<1x16x8xf32>
    %59 = vector.shape_cast %53 : vector<16x8xf32> to vector<1x16x8xf32>
    %60 = vector.shape_cast %54 : vector<16x8xf32> to vector<1x16x8xf32>
    %61 = tpu.concatenate %55, %56, %57, %58, %59, %60 in 0 : vector<1x16x8xf32>, vector<1x16x8xf32>, vector<1x16x8xf32>, vector<1x16x8xf32>, vector<1x16x8xf32>, vector<1x16x8xf32> -> vector<6x16x8xf32>
    %62 = vector.extract_strided_slice %33 {offsets = [0, 96], sizes = [16, 8], strides = [1, 1]} : vector<16x144xf32> to vector<16x8xf32>
    %63 = vector.extract_strided_slice %33 {offsets = [0, 104], sizes = [16, 8], strides = [1, 1]} : vector<16x144xf32> to vector<16x8xf32>
    %64 = vector.extract_strided_slice %33 {offsets = [0, 112], sizes = [16, 8], strides = [1, 1]} : vector<16x144xf32> to vector<16x8xf32>
    %65 = vector.extract_strided_slice %33 {offsets = [0, 120], sizes = [16, 8], strides = [1, 1]} : vector<16x144xf32> to vector<16x8xf32>
    %66 = vector.extract_strided_slice %33 {offsets = [0, 128], sizes = [16, 8], strides = [1, 1]} : vector<16x144xf32> to vector<16x8xf32>
    %67 = vector.extract_strided_slice %33 {offsets = [0, 136], sizes = [16, 8], strides = [1, 1]} : vector<16x144xf32> to vector<16x8xf32>
    %68 = vector.shape_cast %62 : vector<16x8xf32> to vector<1x16x8xf32>
    %69 = vector.shape_cast %63 : vector<16x8xf32> to vector<1x16x8xf32>
    %70 = vector.shape_cast %64 : vector<16x8xf32> to vector<1x16x8xf32>
    %71 = vector.shape_cast %65 : vector<16x8xf32> to vector<1x16x8xf32>
    %72 = vector.shape_cast %66 : vector<16x8xf32> to vector<1x16x8xf32>
    %73 = vector.shape_cast %67 : vector<16x8xf32> to vector<1x16x8xf32>
    %74 = tpu.concatenate %68, %69, %70, %71, %72, %73 in 0 : vector<1x16x8xf32>, vector<1x16x8xf32>, vector<1x16x8xf32>, vector<1x16x8xf32>, vector<1x16x8xf32>, vector<1x16x8xf32> -> vector<6x16x8xf32>
    "tpu.trace_start"() <{level = 10 : i32, message = "hqd,hkd->hqk"}> : () -> ()
    %cst_11 = arith.constant dense<0.000000e+00> : vector<6x16x16xf32>
    %75 = tpu.matmul %48, %61, %cst_11 {dimension_numbers = #tpu.dot_dimension_numbers<[2], [2], [1], [1], [0, 0, 0, 1, 1, 1], [0], [0]>} : vector<6x16x8xf32>, vector<6x16x8xf32>, vector<6x16x16xf32> -> vector<6x16x16xf32>
    "tpu.trace_stop"() : () -> ()
    %76 = vector.shape_cast %9 : vector<16x16xf32> to vector<1x16x16xf32>
    %77 = vector.broadcast %76 : vector<1x16x16xf32> to vector<6x16x16xf32>
    %78 = arith.addf %75, %77 : vector<6x16x16xf32>
    %cst_12 = arith.constant dense<0xFF800000> : vector<6x16xf32>
    %79 = vector.multi_reduction <maximumf>, %78, %cst_12 [2] : vector<6x16x16xf32> to vector<6x16xf32>
    %80 = vector.shape_cast %79 : vector<6x16xf32> to vector<6x16x1xf32>
    %81 = vector.broadcast %80 : vector<6x16x1xf32> to vector<6x16x16xf32>
    %82 = arith.subf %78, %81 : vector<6x16x16xf32>
    %83 = math.exp %82 : vector<6x16x16xf32>
    %cst_13 = arith.constant dense<0.000000e+00> : vector<6x16xf32>
    %84 = vector.multi_reduction <add>, %83, %cst_13 [2] : vector<6x16x16xf32> to vector<6x16xf32>
    %85 = vector.shape_cast %84 : vector<6x16xf32> to vector<6x16x1xf32>
    %86 = tpu.reciprocal %85 : vector<6x16x1xf32> -> vector<6x16x1xf32>
    %87 = vector.broadcast %86 : vector<6x16x1xf32> to vector<6x16x16xf32>
    %88 = arith.mulf %83, %87 : vector<6x16x16xf32>
    "tpu.trace_start"() <{level = 10 : i32, message = "hqk,hkd->hqd"}> : () -> ()
    %cst_14 = arith.constant dense<0.000000e+00> : vector<6x16x8xf32>
    %89 = tpu.matmul %88, %74, %cst_14 {dimension_numbers = #tpu.dot_dimension_numbers<[2], [1], [1], [2], [0, 0, 0, 1, 1, 2], [0], [0]>} : vector<6x16x16xf32>, vector<6x16x8xf32>, vector<6x16x8xf32> -> vector<6x16x8xf32>
    "tpu.trace_stop"() : () -> ()
    %c0_15 = arith.constant 0 : index
    %c0_16 = arith.constant 0 : index
    %c0_17 = arith.constant 0 : index
    %90 = vector.load %arg3[%c0_15, %c0_16, %c0_17] : memref<6x8x48xf32, #tpu.memory_space<vmem>>, vector<6x8x48xf32>
    "tpu.trace_start"() <{level = 10 : i32, message = "hqd,hdc->hqc"}> : () -> ()
    %cst_18 = arith.constant dense<0.000000e+00> : vector<6x16x48xf32>
    %91 = tpu.matmul %89, %90, %cst_18 {dimension_numbers = #tpu.dot_dimension_numbers<[2], [1], [1], [2], [0, 0, 0, 1, 1, 2], [0], [0]>} : vector<6x16x8xf32>, vector<6x8x48xf32>, vector<6x16x48xf32> -> vector<6x16x48xf32>
    "tpu.trace_stop"() : () -> ()
    %cst_19 = arith.constant dense<0.000000e+00> : vector<16x48xf32>
    %92 = vector.multi_reduction <add>, %91, %cst_19 [0] : vector<6x16x48xf32> to vector<16x48xf32>
    %93 = vector.broadcast %6 : vector<1x48xf32> to vector<16x48xf32>
    %94 = arith.addf %92, %93 : vector<16x48xf32>
    %95 = arith.addf %0, %94 : vector<16x48xf32>
    %cst_20 = arith.constant dense<0.000000e+00> : vector<16xf32>
    %96 = vector.multi_reduction <add>, %95, %cst_20 [1] : vector<16x48xf32> to vector<16xf32>
    %97 = vector.shape_cast %96 : vector<16xf32> to vector<16x1xf32>
    %cst_21 = arith.constant 4.800000e+01 : f32
    %98 = vector.broadcast %cst_21 : f32 to vector<16x1xf32>
    %99 = arith.divf %97, %98 : vector<16x1xf32>
    %100 = vector.broadcast %99 : vector<16x1xf32> to vector<16x48xf32>
    %101 = arith.subf %95, %100 : vector<16x48xf32>
    %102 = arith.mulf %101, %101 : vector<16x48xf32>
    %cst_22 = arith.constant dense<0.000000e+00> : vector<16xf32>
    %103 = vector.multi_reduction <add>, %102, %cst_22 [1] : vector<16x48xf32> to vector<16xf32>
    %104 = vector.shape_cast %103 : vector<16xf32> to vector<16x1xf32>
    %cst_23 = arith.constant 4.800000e+01 : f32
    %105 = vector.broadcast %cst_23 : f32 to vector<16x1xf32>
    %106 = arith.divf %104, %105 : vector<16x1xf32>
    %107 = vector.broadcast %99 : vector<16x1xf32> to vector<16x48xf32>
    %108 = arith.subf %95, %107 : vector<16x48xf32>
    %cst_24 = arith.constant 9.99999974E-6 : f32
    %109 = vector.broadcast %cst_24 : f32 to vector<16x1xf32>
    %110 = arith.addf %106, %109 : vector<16x1xf32>
    %111 = math.rsqrt %110 : vector<16x1xf32>
    %112 = vector.broadcast %111 : vector<16x1xf32> to vector<16x48xf32>
    %113 = arith.mulf %108, %112 : vector<16x48xf32>
    %114 = vector.broadcast %4 : vector<1x48xf32> to vector<16x48xf32>
    %115 = arith.mulf %113, %114 : vector<16x48xf32>
    %116 = vector.broadcast %5 : vector<1x48xf32> to vector<16x48xf32>
    %117 = arith.addf %115, %116 : vector<16x48xf32>
    %c0_25 = arith.constant 0 : index
    %c0_26 = arith.constant 0 : index
    %118 = vector.load %arg4[%c0_25, %c0_26] : memref<48x192xf32, #tpu.memory_space<vmem>>, vector<48x192xf32>
    %cst_27 = arith.constant dense<0.000000e+00> : vector<16x192xf32>
    %119 = tpu.matmul %117, %118, %cst_27 {dimension_numbers = #tpu.dot_dimension_numbers<[1], [0], [0], [1], [0, 0, 1, 1], [], []>} : vector<16x48xf32>, vector<48x192xf32>, vector<16x192xf32> -> vector<16x192xf32>
    %120 = vector.broadcast %7 : vector<1x192xf32> to vector<16x192xf32>
    %121 = arith.addf %119, %120 : vector<16x192xf32>
    %cst_28 = arith.constant 0.000000e+00 : f32
    %122 = vector.broadcast %cst_28 : f32 to vector<16x192xf32>
    %123 = arith.maximumf %121, %122 : vector<16x192xf32>
    %c0_29 = arith.constant 0 : index
    %c0_30 = arith.constant 0 : index
    %124 = vector.load %arg5[%c0_29, %c0_30] : memref<192x48xf32, #tpu.memory_space<vmem>>, vector<192x48xf32>
    %cst_31 = arith.constant dense<0.000000e+00> : vector<16x48xf32>
    %125 = tpu.matmul %123, %124, %cst_31 {dimension_numbers = #tpu.dot_dimension_numbers<[1], [0], [0], [1], [0, 0, 1, 1], [], []>} : vector<16x192xf32>, vector<192x48xf32>, vector<16x48xf32> -> vector<16x48xf32>
    %126 = vector.broadcast %8 : vector<1x48xf32> to vector<16x48xf32>
    %127 = arith.addf %125, %126 : vector<16x48xf32>
    %128 = arith.addf %95, %127 : vector<16x48xf32>
    %cst_32 = arith.constant 0.000000e+00 : f32
    %129 = vector.broadcast %cst_32 : f32 to vector<16x80xf32>
    %130 = tpu.concatenate %128, %129 in 1 : vector<16x48xf32>, vector<16x80xf32> -> vector<16x128xf32>
    %c0_33 = arith.constant 0 : index
    %c0_34 = arith.constant 0 : index
    %131 = vector.load %arg6[%c0_33, %c0_34] : memref<16x128xf32, #tpu.memory_space<vmem>>, vector<16x128xf32>
    tpu.vector_store %arg6[%c0_33, %c0_34], %130 {strides = array<i32>} : memref<16x128xf32, #tpu.memory_space<vmem>>, vector<16x128xf32>,
    return
  }
}

</mosaic_0001>

<llo_original>
// kernel: tpu_custom_call.1
$region0: #{tpu_custom_call.1}
  #allocation0 [shape = 'u32[]', space=smem, size = 0x4, offset = 0x4, fixed_abs, tag = 'smem constant byte address 0x4 - core index']
  #allocation1 [shape = 'u32[72,128]{1,0:T(1,128)}', space=vmem, size = 0x9000, scoped, tag = 'internal scratch']
  %s0 = inlined_call_operand.hbm [shape: f32[16,48], index: 0, kind: input, shape index: {}]
  %s1 = inlined_call_operand.vmem [shape: f32[24,192], index: 1, kind: input, shape index: {}]
  %s2 = inlined_call_operand.vmem [shape: f32[48,144], index: 2, kind: input, shape index: {}]
  %s3 = inlined_call_operand.vmem [shape: f32[6,8,48], index: 3, kind: input, shape index: {}]
  %s4 = inlined_call_operand.vmem [shape: f32[48,192], index: 4, kind: input, shape index: {}]
  %s5 = inlined_call_operand.vmem [shape: f32[192,48], index: 5, kind: input, shape index: {}]
  %s6 = inlined_call_operand.hbm [shape: f32[16,128], index: 6, kind: output, shape index: {}]
  %s7 = sld [smem:[#allocation0]]
  $region38: #{tpu_custom_call.1} parent=0
    _
  %s9 = ssub.s32 1, %s7
  %s10 = scalar_select 0, %s9, %s7
  $region1: #{tpu_custom_call.1} parent=0
    #allocation2 [shape = 'u8[8192]{0}', space=vmem, size = 0x2000, scoped, tag = 'input window, operand 0, single buffered']
    #allocation3 [shape = 's32[1]{0}', space=sflag, size = 0x4, scoped, tag = 'scoped memory for tpu_custom_call.1']
    #allocation4 [shape = 's32[1]{0}', space=sflag, size = 0x4, scoped, tag = 'scoped memory for tpu_custom_call.1']
    #allocation5 [shape = 'u8[8192]{0}', space=vmem, size = 0x2000, scoped, tag = 'output window, operand 0, single buffered']
    %11 = vsyncpa [#allocation3], 0
    %12 = vsyncpa [#allocation4], 0
    // Predicated region
    $region2: #{tpu_custom_call.1} parent=1 // pred_check
      _
    $region3: #{tpu_custom_call.1} parent=1 // pred_check_branch
      %14 = sbr.rel (0) target = $region5
    $region4: #{tpu_custom_call.1} parent=1 // pred_region
      %16 = vsyncadd [#allocation3], 0
      %s17 = sshll.u32 %s0, 4
      %s18 = int_to_ptr.hbm [resolvable:$true] %s17
      %s19 = sshll.u32 [#allocation2], 4
      %s20 = int_to_ptr.vmem [resolvable:$true] %s19
      %25 = dma.hbm_to_vmem [thread:$0]  %s18, 256, %s20, [#allocation3], 128, 128, 8
    $region5: #{tpu_custom_call.1} parent=1 // pred_fallthru
      _
    // Predicated region
    $region6: #{tpu_custom_call.1} parent=1 // pred_check
      _
    $region7: #{tpu_custom_call.1} parent=1 // pred_check_branch
      %27 = sbr.rel (0) target = $region9
    $region8: #{tpu_custom_call.1} parent=1 // pred_region
      _
    $region9: #{tpu_custom_call.1} parent=1 // pred_fallthru
      _
    // Predicated region
    $region10: #{tpu_custom_call.1} parent=1 // pred_check
      _
    $region11: #{tpu_custom_call.1} parent=1 // pred_check_branch
      %29 = sbr.rel (0) target = $region13
    $region12: #{tpu_custom_call.1} parent=1 // pred_region
      _
    $region13: #{tpu_custom_call.1} parent=1 // pred_fallthru
      _
    // Predicated region
    $region14: #{tpu_custom_call.1} parent=1 // pred_check
      _
    $region15: #{tpu_custom_call.1} parent=1 // pred_check_branch
      %31 = sbr.rel (0) target = $region17
    $region16: #{tpu_custom_call.1} parent=1 // pred_region
      _
    $region17: #{tpu_custom_call.1} parent=1 // pred_fallthru
      _
    // Predicated region
    $region18: #{tpu_custom_call.1} parent=1 // pred_check
      _
    $region19: #{tpu_custom_call.1} parent=1 // pred_check_branch
      %33 = sbr.rel (0) target = $region21
    $region20: #{tpu_custom_call.1} parent=1 // pred_region
      _
    $region21: #{tpu_custom_call.1} parent=1 // pred_fallthru
      _
    // Predicated region
    $region22: #{tpu_custom_call.1} parent=1 // pred_check
      _
    $region23: #{tpu_custom_call.1} parent=1 // pred_check_branch
      %35 = sbr.rel (0) target = $region25
    $region24: #{tpu_custom_call.1} parent=1 // pred_region
      _
    $region25: #{tpu_custom_call.1} parent=1 // pred_fallthru
      _
    // Predicated region
    $region26: #{tpu_custom_call.1} parent=1 // pred_check
      _
    $region27: #{tpu_custom_call.1} parent=1 // pred_check_branch
      %37 = sbr.rel (0) target = $region29
    $region28: #{tpu_custom_call.1} parent=1 // pred_region
      %39 = dma.done [#allocation3], 256
    $region29: #{tpu_custom_call.1} parent=1 // pred_fallthru
      _
    %v40 = vld [vmem:[#allocation2] sm:$0xff]
    %v41 = vld [vmem:[#allocation2 + $0x8] sm:$0xff]
    %v42 = vld [vmem:[%s1] sm:$0xff]
    %v43 = vld [vmem:[%s1 + $0x8] sm:$0xff]
    %v44 = vld [vmem:[%s1 + $0x10] sm:$0xff]
    %v45 = vld [vmem:[%s1 + $0x20] sm:$0xff]
    %vm46 = vcmask 392192
    %v47 = vsel %vm46, %v40, 0.0
    %48 = vadd.xlane.f32.xlu0 %v47
    %v49 = vpop.xlane.xlu0 %48
    %v50 = vsel %vm46, %v41, 0.0
    %51 = vadd.xlane.f32.xlu0 %v50
    %v52 = vpop.xlane.xlu0 %51
    %v53 = vrcp.pop 48.0
    %v54 = vmul.f32 48.0, %v53
    %v55 = vsub.f32 1.0, %v54
    %v56 = vmul.f32 %v53, %v55
    %v57 = vadd.f32 %v53, %v56
    %vm58 = vweird.f32 %v53
    %v59 = vsel %vm58, %v53, %v57
    %v60 = vmul.f32 %v49, %v59
    %v61 = vmul.f32 %v52, %v59
    %v62 = vsub.f32 %v40, %v60
    %v63 = vsub.f32 %v41, %v61
    %v64 = vmul.f32 %v62, %v62
    %v65 = vmul.f32 %v63, %v63
    %v66 = vsel %vm46, %v64, 0.0
    %67 = vadd.xlane.f32.xlu0 %v66
    %v68 = vpop.xlane.xlu0 %67
    %v69 = vsel %vm46, %v65, 0.0
    %70 = vadd.xlane.f32.xlu0 %v69
    %v71 = vpop.xlane.xlu0 %70
    %v72 = vmul.f32 %v68, %v59
    %v73 = vmul.f32 %v71, %v59
    %v74 = vadd.f32 %v72, 1e-05
    %v75 = vadd.f32 %v73, 1e-05
    %v76 = vrsqrt.pop %v74
    %v77 = vmul.f32 %v76, %v74
    %v78 = vmul.f32 %v77, %v76
    %v79 = vmul.f32 0.5, %v78
    %v80 = vsub.f32 1.5, %v79
    %v81 = vmul.f32 %v76, %v80
    %vm82 = vweird.f32 %v74
    %vm83 = vweird.f32 %v76
    %vm84 = vmor %vm82, %vm83
    %v85 = vsel %vm84, %v76, %v81
    %v86 = vrsqrt.pop %v75
    %v87 = vmul.f32 %v86, %v75
    %v88 = vmul.f32 %v87, %v86
    %v89 = vmul.f32 0.5, %v88
    %v90 = vsub.f32 1.5, %v89
    %v91 = vmul.f32 %v86, %v90
    %vm92 = vweird.f32 %v75
    %vm93 = vweird.f32 %v86
    %vm94 = vmor %vm92, %vm93
    %v95 = vsel %vm94, %v86, %v91
    %v96 = vmul.f32 %v62, %v85
    %v97 = vmul.f32 %v63, %v95
    %v98 = vperm.slane %v42, 0
    %v99 = vmul.f32 %v96, %v98
    %v100 = vmul.f32 %v97, %v98
    %v101 = vperm.slane %v42, 1
    %v102 = vadd.f32 %v99, %v101
    %v103 = vadd.f32 %v100, %v101
    %v104 = vld [vmem:[%s2] sm:$0xff]
    %v105 = vld [vmem:[%s2 + $0x8] sm:$0xff]
    %v106 = vld [vmem:[%s2 + $0x10] sm:$0xff]
    %v107 = vld [vmem:[%s2 + $0x18] sm:$0xff]
    %v108 = vld [vmem:[%s2 + $0x20] sm:$0xff]
    %v109 = vld [vmem:[%s2 + $0x28] sm:$0xff]
    %v110 = vld [vmem:[%s2 + $0x30] sm:$0xff]
    %v111 = vld [vmem:[%s2 + $0x38] sm:$0xff]
    %v112 = vld [vmem:[%s2 + $0x40] sm:$0xff]
    %v113 = vld [vmem:[%s2 + $0x48] sm:$0xff]
    %v114 = vld [vmem:[%s2 + $0x50] sm:$0xff]
    %v115 = vld [vmem:[%s2 + $0x58] sm:$0xff]
    %v117 = vsel %vm46, %v102, 0
    %v120 = vsel %vm46, %v103, 0
    %122 = vmatpush.msra.mxu0 0.0
    %123 = vmatpush.msra.mxu0 0.0
    %124 = vmatpush.msra.mxu0 0.0
    %125 = vmatpush.msra.mxu0 0.0
    %126 = vmatpush.msra.mxu0 0.0
    %127 = vmatpush.msra.mxu0 0.0
    %128 = vmatpush.msra.mxu0 0.0
    %129 = vmatpush.msra.mxu0 0.0
    %130 = vmatpush.msra.mxu0 0.0
    %131 = vmatpush.msra.mxu0 0.0
    %132 = vmatpush.msra.mxu0 %v114
    %133 = vmatpush.msra.mxu0 %v112
    %134 = vmatpush.msra.mxu0 %v110
    %135 = vmatpush.msra.mxu0 %v108
    %136 = vmatpush.msra.mxu0 %v106
    %137 = vmatpush.msra.mxu0 %v104
    %138 = vmatmul.f32.gmra.mxu0 %v117
    %v139 = vpop.f32.mrf.mxu0
    %v140 = vadd.f32 0.0, %v139
    %141 = vmatmul.f32.gmra.mxu0 %v120
    %v142 = vpop.f32.mrf.mxu0
    %v143 = vadd.f32 0.0, %v142
    %144 = vdwg.mxu0
    %145 = vmatpush.msra.mxu0 0.0
    %146 = vmatpush.msra.mxu0 0.0
    %147 = vmatpush.msra.mxu0 0.0
    %148 = vmatpush.msra.mxu0 0.0
    %149 = vmatpush.msra.mxu0 0.0
    %150 = vmatpush.msra.mxu0 0.0
    %151 = vmatpush.msra.mxu0 0.0
    %152 = vmatpush.msra.mxu0 0.0
    %153 = vmatpush.msra.mxu0 0.0
    %154 = vmatpush.msra.mxu0 0.0
    %155 = vmatpush.msra.mxu0 %v115
    %156 = vmatpush.msra.mxu0 %v113
    %157 = vmatpush.msra.mxu0 %v111
    %158 = vmatpush.msra.mxu0 %v109
    %159 = vmatpush.msra.mxu0 %v107
    %160 = vmatpush.msra.mxu0 %v105
    %161 = vmatmul.f32.gmra.mxu0 %v117
    %v162 = vpop.f32.mrf.mxu0
    %v163 = vadd.f32 0.0, %v162
    %164 = vmatmul.f32.gmra.mxu0 %v120
    %v165 = vpop.f32.mrf.mxu0
    %v166 = vadd.f32 0.0, %v165
    %167 = vdwg.mxu0
    %170 = vrot.lane.b32.xlu0 %v140, 120
    %v171 = vpop.permute.xlu0 %170
    %172 = vrot.lane.b32.xlu0 %v143, 120
    %v173 = vpop.permute.xlu0 %172
    %176 = vrot.lane.b32.xlu0 %v140, 112
    %v177 = vpop.permute.xlu0 %176
    %178 = vrot.lane.b32.xlu0 %v143, 112
    %v179 = vpop.permute.xlu0 %178
    %182 = vrot.lane.b32.xlu0 %v140, 104
    %v183 = vpop.permute.xlu0 %182
    %184 = vrot.lane.b32.xlu0 %v143, 104
    %v185 = vpop.permute.xlu0 %184
    %188 = vrot.lane.b32.xlu0 %v140, 96
    %v189 = vpop.permute.xlu0 %188
    %190 = vrot.lane.b32.xlu0 %v143, 96
    %v191 = vpop.permute.xlu0 %190
    %194 = vrot.lane.b32.xlu0 %v140, 88
    %v195 = vpop.permute.xlu0 %194
    %196 = vrot.lane.b32.xlu0 %v143, 88
    %v197 = vpop.permute.xlu0 %196
    %v200 = vmul.f32 %v140, 0.14433756
    %v201 = vmul.f32 %v143, 0.14433756
    %v202 = vmul.f32 %v171, 0.14433756
    %v203 = vmul.f32 %v173, 0.14433756
    %v204 = vmul.f32 %v177, 0.14433756
    %v205 = vmul.f32 %v179, 0.14433756
    %v206 = vmul.f32 %v183, 0.14433756
    %v207 = vmul.f32 %v185, 0.14433756
    %v208 = vmul.f32 %v189, 0.14433756
    %v209 = vmul.f32 %v191, 0.14433756
    %v210 = vmul.f32 %v195, 0.14433756
    %v211 = vmul.f32 %v197, 0.14433756
    %214 = vrot.lane.b32.xlu0 %v163, 96
    %v215 = vpop.permute.xlu0 %214
    %216 = vrot.lane.b32.xlu0 %v166, 96
    %v217 = vpop.permute.xlu0 %216
    %218 = vrot.lane.b32.xlu0 %v163, 88
    %v219 = vpop.permute.xlu0 %218
    %220 = vrot.lane.b32.xlu0 %v166, 88
    %v221 = vpop.permute.xlu0 %220
    %222 = vrot.lane.b32.xlu0 %v140, 80
    %v223 = vpop.permute.xlu0 %222
    %224 = vrot.lane.b32.xlu0 %v143, 80
    %v225 = vpop.permute.xlu0 %224
    %vm226 = vcmask 64512
    %v228 = vsel %vm226, %v200, 0
    %v231 = vsel %vm226, %v201, 0
    %v233 = vsel %vm226, %v223, 0
    %v235 = vsel %vm226, %v225, 0
    %237 = vmatpush.xpose.msra.mxu0 0.0
    %238 = vmatpush.xpose.msra.mxu0 0.0
    %239 = vmatpush.xpose.msra.mxu0 0.0
    %240 = vmatpush.xpose.msra.mxu0 0.0
    %241 = vmatpush.xpose.msra.mxu0 0.0
    %242 = vmatpush.xpose.msra.mxu0 0.0
    %243 = vmatpush.xpose.msra.mxu0 0.0
    %244 = vmatpush.xpose.msra.mxu0 0.0
    %245 = vmatpush.xpose.msra.mxu0 0.0
    %246 = vmatpush.xpose.msra.mxu0 0.0
    %247 = vmatpush.xpose.msra.mxu0 0.0
    %248 = vmatpush.xpose.msra.mxu0 0.0
    %249 = vmatpush.xpose.msra.mxu0 0.0
    %250 = vmatpush.xpose.msra.mxu0 0.0
    %251 = vmatpush.xpose.msra.mxu0 %v235
    %252 = vmatpush.xpose.msra.mxu0 %v233
    %253 = vmatmul.f32.gmra.mxu0 %v228
    %v254 = vpop.f32.mrf.mxu0
    %v255 = vadd.f32 %v44, %v254
    %256 = vmatmul.f32.gmra.mxu0 %v231
    %v257 = vpop.f32.mrf.mxu0
    %v258 = vadd.f32 %v45, %v257
    %259 = vdwg.mxu0
    %260 = vrot.lane.b32.xlu0 %v171, 80
    %v261 = vpop.permute.xlu0 %260
    %262 = vrot.lane.b32.xlu0 %v173, 80
    %v263 = vpop.permute.xlu0 %262
    %v265 = vsel %vm226, %v202, 0
    %v268 = vsel %vm226, %v203, 0
    %v270 = vsel %vm226, %v261, 0
    %v272 = vsel %vm226, %v263, 0
    %274 = vmatpush.xpose.msra.mxu0 0.0
    %275 = vmatpush.xpose.msra.mxu0 0.0
    %276 = vmatpush.xpose.msra.mxu0 0.0
    %277 = vmatpush.xpose.msra.mxu0 0.0
    %278 = vmatpush.xpose.msra.mxu0 0.0
    %279 = vmatpush.xpose.msra.mxu0 0.0
    %280 = vmatpush.xpose.msra.mxu0 0.0
    %281 = vmatpush.xpose.msra.mxu0 0.0
    %282 = vmatpush.xpose.msra.mxu0 0.0
    %283 = vmatpush.xpose.msra.mxu0 0.0
    %284 = vmatpush.xpose.msra.mxu0 0.0
    %285 = vmatpush.xpose.msra.mxu0 0.0
    %286 = vmatpush.xpose.msra.mxu0 0.0
    %287 = vmatpush.xpose.msra.mxu0 0.0
    %288 = vmatpush.xpose.msra.mxu0 %v272
    %289 = vmatpush.xpose.msra.mxu0 %v270
    %290 = vmatmul.f32.gmra.mxu0 %v265
    %v291 = vpop.f32.mrf.mxu0
    %v292 = vadd.f32 %v44, %v291
    %293 = vmatmul.f32.gmra.mxu0 %v268
    %v294 = vpop.f32.mrf.mxu0
    %v295 = vadd.f32 %v45, %v294
    %296 = vdwg.mxu0
    %297 = vrot.lane.b32.xlu0 %v177, 80
    %v298 = vpop.permute.xlu0 %297
    %299 = vrot.lane.b32.xlu0 %v179, 80
    %v300 = vpop.permute.xlu0 %299
    %v302 = vsel %vm226, %v204, 0
    %v305 = vsel %vm226, %v205, 0
    %v307 = vsel %vm226, %v298, 0
    %v309 = vsel %vm226, %v300, 0
    %311 = vmatpush.xpose.msra.mxu0 0.0
    %312 = vmatpush.xpose.msra.mxu0 0.0
    %313 = vmatpush.xpose.msra.mxu0 0.0
    %314 = vmatpush.xpose.msra.mxu0 0.0
    %315 = vmatpush.xpose.msra.mxu0 0.0
    %316 = vmatpush.xpose.msra.mxu0 0.0
    %317 = vmatpush.xpose.msra.mxu0 0.0
    %318 = vmatpush.xpose.msra.mxu0 0.0
    %319 = vmatpush.xpose.msra.mxu0 0.0
    %320 = vmatpush.xpose.msra.mxu0 0.0
    %321 = vmatpush.xpose.msra.mxu0 0.0
    %322 = vmatpush.xpose.msra.mxu0 0.0
    %323 = vmatpush.xpose.msra.mxu0 0.0
    %324 = vmatpush.xpose.msra.mxu0 0.0
    %325 = vmatpush.xpose.msra.mxu0 %v309
    %326 = vmatpush.xpose.msra.mxu0 %v307
    %327 = vmatmul.f32.gmra.mxu0 %v302
    %v328 = vpop.f32.mrf.mxu0
    %v329 = vadd.f32 %v44, %v328
    %330 = vmatmul.f32.gmra.mxu0 %v305
    %v331 = vpop.f32.mrf.mxu0
    %v332 = vadd.f32 %v45, %v331
    %333 = vdwg.mxu0
    %334 = vrot.lane.b32.xlu0 %v183, 80
    %v335 = vpop.permute.xlu0 %334
    %336 = vrot.lane.b32.xlu0 %v185, 80
    %v337 = vpop.permute.xlu0 %336
    %v339 = vsel %vm226, %v206, 0
    %v342 = vsel %vm226, %v207, 0
    %v344 = vsel %vm226, %v335, 0
    %v346 = vsel %vm226, %v337, 0
    %348 = vmatpush.xpose.msra.mxu0 0.0
    %349 = vmatpush.xpose.msra.mxu0 0.0
    %350 = vmatpush.xpose.msra.mxu0 0.0
    %351 = vmatpush.xpose.msra.mxu0 0.0
    %352 = vmatpush.xpose.msra.mxu0 0.0
    %353 = vmatpush.xpose.msra.mxu0 0.0
    %354 = vmatpush.xpose.msra.mxu0 0.0
    %355 = vmatpush.xpose.msra.mxu0 0.0
    %356 = vmatpush.xpose.msra.mxu0 0.0
    %357 = vmatpush.xpose.msra.mxu0 0.0
    %358 = vmatpush.xpose.msra.mxu0 0.0
    %359 = vmatpush.xpose.msra.mxu0 0.0
    %360 = vmatpush.xpose.msra.mxu0 0.0
    %361 = vmatpush.xpose.msra.mxu0 0.0
    %362 = vmatpush.xpose.msra.mxu0 %v346
    %363 = vmatpush.xpose.msra.mxu0 %v344
    %364 = vmatmul.f32.gmra.mxu0 %v339
    %v365 = vpop.f32.mrf.mxu0
    %v366 = vadd.f32 %v44, %v365
    %367 = vmatmul.f32.gmra.mxu0 %v342
    %v368 = vpop.f32.mrf.mxu0
    %v369 = vadd.f32 %v45, %v368
    %370 = vdwg.mxu0
    %371 = vrot.lane.b32.xlu0 %v189, 80
    %v372 = vpop.permute.xlu0 %371
    %373 = vrot.lane.b32.xlu0 %v191, 80
    %v374 = vpop.permute.xlu0 %373
    %v376 = vsel %vm226, %v208, 0
    %v379 = vsel %vm226, %v209, 0
    %v381 = vsel %vm226, %v372, 0
    %v383 = vsel %vm226, %v374, 0
    %385 = vmatpush.xpose.msra.mxu0 0.0
    %386 = vmatpush.xpose.msra.mxu0 0.0
    %387 = vmatpush.xpose.msra.mxu0 0.0
    %388 = vmatpush.xpose.msra.mxu0 0.0
    %389 = vmatpush.xpose.msra.mxu0 0.0
    %390 = vmatpush.xpose.msra.mxu0 0.0
    %391 = vmatpush.xpose.msra.mxu0 0.0
    %392 = vmatpush.xpose.msra.mxu0 0.0
    %393 = vmatpush.xpose.msra.mxu0 0.0
    %394 = vmatpush.xpose.msra.mxu0 0.0
    %395 = vmatpush.xpose.msra.mxu0 0.0
    %396 = vmatpush.xpose.msra.mxu0 0.0
    %397 = vmatpush.xpose.msra.mxu0 0.0
    %398 = vmatpush.xpose.msra.mxu0 0.0
    %399 = vmatpush.xpose.msra.mxu0 %v383
    %400 = vmatpush.xpose.msra.mxu0 %v381
    %401 = vmatmul.f32.gmra.mxu0 %v376
    %v402 = vpop.f32.mrf.mxu0
    %v403 = vadd.f32 %v44, %v402
    %404 = vmatmul.f32.gmra.mxu0 %v379
    %v405 = vpop.f32.mrf.mxu0
    %v406 = vadd.f32 %v45, %v405
    %407 = vdwg.mxu0
    %408 = vrot.lane.b32.xlu0 %v195, 80
    %v409 = vpop.permute.xlu0 %408
    %410 = vrot.lane.b32.xlu0 %v197, 80
    %v411 = vpop.permute.xlu0 %410
    %v413 = vsel %vm226, %v210, 0
    %v416 = vsel %vm226, %v211, 0
    %v418 = vsel %vm226, %v409, 0
    %v420 = vsel %vm226, %v411, 0
    %422 = vmatpush.xpose.msra.mxu0 0.0
    %423 = vmatpush.xpose.msra.mxu0 0.0
    %424 = vmatpush.xpose.msra.mxu0 0.0
    %425 = vmatpush.xpose.msra.mxu0 0.0
    %426 = vmatpush.xpose.msra.mxu0 0.0
    %427 = vmatpush.xpose.msra.mxu0 0.0
    %428 = vmatpush.xpose.msra.mxu0 0.0
    %429 = vmatpush.xpose.msra.mxu0 0.0
    %430 = vmatpush.xpose.msra.mxu0 0.0
    %431 = vmatpush.xpose.msra.mxu0 0.0
    %432 = vmatpush.xpose.msra.mxu0 0.0
    %433 = vmatpush.xpose.msra.mxu0 0.0
    %434 = vmatpush.xpose.msra.mxu0 0.0
    %435 = vmatpush.xpose.msra.mxu0 0.0
    %436 = vmatpush.xpose.msra.mxu0 %v420
    %437 = vmatpush.xpose.msra.mxu0 %v418
    %438 = vmatmul.f32.gmra.mxu0 %v413
    %v439 = vpop.f32.mrf.mxu0
    %v440 = vadd.f32 %v44, %v439
    %441 = vmatmul.f32.gmra.mxu0 %v416
    %v442 = vpop.f32.mrf.mxu0
    %v443 = vadd.f32 %v45, %v442
    %444 = vdwg.mxu0
    %vm445 = vcmask 130048
    %v446 = vsel %vm445, %v255, -inf
    %447 = vmax.xlane.f32.xlu0 %v446
    %v448 = vpop.xlane.xlu0 %447
    %v449 = vsel %vm445, %v258, -inf
    %450 = vmax.xlane.f32.xlu0 %v449
    %v451 = vpop.xlane.xlu0 %450
    %v452 = vsel %vm445, %v292, -inf
    %453 = vmax.xlane.f32.xlu0 %v452
    %v454 = vpop.xlane.xlu0 %453
    %v455 = vsel %vm445, %v295, -inf
    %456 = vmax.xlane.f32.xlu0 %v455
    %v457 = vpop.xlane.xlu0 %456
    %v458 = vsel %vm445, %v329, -inf
    %459 = vmax.xlane.f32.xlu0 %v458
    %v460 = vpop.xlane.xlu0 %459
    %v461 = vsel %vm445, %v332, -inf
    %462 = vmax.xlane.f32.xlu0 %v461
    %v463 = vpop.xlane.xlu0 %462
    %v464 = vsel %vm445, %v366, -inf
    %465 = vmax.xlane.f32.xlu0 %v464
    %v466 = vpop.xlane.xlu0 %465
    %v467 = vsel %vm445, %v369, -inf
    %468 = vmax.xlane.f32.xlu0 %v467
    %v469 = vpop.xlane.xlu0 %468
    %v470 = vsel %vm445, %v403, -inf
    %471 = vmax.xlane.f32.xlu0 %v470
    %v472 = vpop.xlane.xlu0 %471
    %v473 = vsel %vm445, %v406, -inf
    %474 = vmax.xlane.f32.xlu0 %v473
    %v475 = vpop.xlane.xlu0 %474
    %v476 = vsel %vm445, %v440, -inf
    %477 = vmax.xlane.f32.xlu0 %v476
    %v478 = vpop.xlane.xlu0 %477
    %v479 = vsel %vm445, %v443, -inf
    %480 = vmax.xlane.f32.xlu0 %v479
    %v481 = vpop.xlane.xlu0 %480
    %v482 = vsub.f32 %v255, %v448
    %v483 = vsub.f32 %v258, %v451
    %v484 = vsub.f32 %v292, %v454
    %v485 = vsub.f32 %v295, %v457
    %v486 = vsub.f32 %v329, %v460
    %v487 = vsub.f32 %v332, %v463
    %v488 = vsub.f32 %v366, %v466
    %v489 = vsub.f32 %v369, %v469
    %v490 = vsub.f32 %v403, %v472
    %v491 = vsub.f32 %v406, %v475
    %v492 = vsub.f32 %v440, %v478
    %v493 = vsub.f32 %v443, %v481
    %v494 = vmul.f32 %v482, 1.442695
    %v495 = vpow.pop %v494
    %v496 = vmul.f32 %v483, 1.442695
    %v497 = vpow.pop %v496
    %v498 = vmul.f32 %v484, 1.442695
    %v499 = vpow.pop %v498
    %v500 = vmul.f32 %v485, 1.442695
    %v501 = vpow.pop %v500
    %v502 = vmul.f32 %v486, 1.442695
    %v503 = vpow.pop %v502
    %v504 = vmul.f32 %v487, 1.442695
    %v505 = vpow.pop %v504
    %v506 = vmul.f32 %v488, 1.442695
    %v507 = vpow.pop %v506
    %v508 = vmul.f32 %v489, 1.442695
    %v509 = vpow.pop %v508
    %v510 = vmul.f32 %v490, 1.442695
    %v511 = vpow.pop %v510
    %v512 = vmul.f32 %v491, 1.442695
    %v513 = vpow.pop %v512
    %v514 = vmul.f32 %v492, 1.442695
    %v515 = vpow.pop %v514
    %v516 = vmul.f32 %v493, 1.442695
    %v517 = vpow.pop %v516
    %v518 = vsel %vm445, %v495, 0.0
    %519 = vadd.xlane.f32.xlu0 %v518
    %v520 = vpop.xlane.xlu0 %519
    %v521 = vsel %vm445, %v497, 0.0
    %522 = vadd.xlane.f32.xlu0 %v521
    %v523 = vpop.xlane.xlu0 %522
    %v524 = vsel %vm445, %v499, 0.0
    %525 = vadd.xlane.f32.xlu0 %v524
    %v526 = vpop.xlane.xlu0 %525
    %v527 = vsel %vm445, %v501, 0.0
    %528 = vadd.xlane.f32.xlu0 %v527
    %v529 = vpop.xlane.xlu0 %528
    %v530 = vsel %vm445, %v503, 0.0
    %531 = vadd.xlane.f32.xlu0 %v530
    %v532 = vpop.xlane.xlu0 %531
    %v533 = vsel %vm445, %v505, 0.0
    %534 = vadd.xlane.f32.xlu0 %v533
    %v535 = vpop.xlane.xlu0 %534
    %v536 = vsel %vm445, %v507, 0.0
    %537 = vadd.xlane.f32.xlu0 %v536
    %v538 = vpop.xlane.xlu0 %537
    %v539 = vsel %vm445, %v509, 0.0
    %540 = vadd.xlane.f32.xlu0 %v539
    %v541 = vpop.xlane.xlu0 %540
    %v542 = vsel %vm445, %v511, 0.0
    %543 = vadd.xlane.f32.xlu0 %v542
    %v544 = vpop.xlane.xlu0 %543
    %v545 = vsel %vm445, %v513, 0.0
    %546 = vadd.xlane.f32.xlu0 %v545
    %v547 = vpop.xlane.xlu0 %546
    %v548 = vsel %vm445, %v515, 0.0
    %549 = vadd.xlane.f32.xlu0 %v548
    %v550 = vpop.xlane.xlu0 %549
    %v551 = vsel %vm445, %v517, 0.0
    %552 = vadd.xlane.f32.xlu0 %v551
    %v553 = vpop.xlane.xlu0 %552
    %v554 = vrcp.pop %v520
    %v555 = vmul.f32 %v520, %v554
    %v556 = vsub.f32 1.0, %v555
    %v557 = vmul.f32 %v554, %v556
    %v558 = vadd.f32 %v554, %v557
    %vm559 = vweird.f32 %v520
    %vm560 = vweird.f32 %v554
    %vm561 = vmor %vm559, %vm560
    %v562 = vsel %vm561, %v554, %v558
    %v563 = vand.u32 2147483647, %v520
    %vm564 = vcmp.eq.f32.partialorder %v563, 8.507059e+37
    %v565 = vand.u32 %v520, 2147483648
    %v566 = vor.u32 1.1754944e-38, %v565
    %v567 = vsel %vm564, %v566, %v562
    %v568 = vrcp.pop %v523
    %v569 = vmul.f32 %v523, %v568
    %v570 = vsub.f32 1.0, %v569
    %v571 = vmul.f32 %v568, %v570
    %v572 = vadd.f32 %v568, %v571
    %vm573 = vweird.f32 %v523
    %vm574 = vweird.f32 %v568
    %vm575 = vmor %vm573, %vm574
    %v576 = vsel %vm575, %v568, %v572
    %v577 = vand.u32 2147483647, %v523
    %vm578 = vcmp.eq.f32.partialorder %v577, 8.507059e+37
    %v579 = vand.u32 %v523, 2147483648
    %v580 = vor.u32 1.1754944e-38, %v579
    %v581 = vsel %vm578, %v580, %v576
    %v582 = vrcp.pop %v526
    %v583 = vmul.f32 %v526, %v582
    %v584 = vsub.f32 1.0, %v583
    %v585 = vmul.f32 %v582, %v584
    %v586 = vadd.f32 %v582, %v585
    %vm587 = vweird.f32 %v526
    %vm588 = vweird.f32 %v582
    %vm589 = vmor %vm587, %vm588
    %v590 = vsel %vm589, %v582, %v586
    %v591 = vand.u32 2147483647, %v526
    %vm592 = vcmp.eq.f32.partialorder %v591, 8.507059e+37
    %v593 = vand.u32 %v526, 2147483648
    %v594 = vor.u32 1.1754944e-38, %v593
    %v595 = vsel %vm592, %v594, %v590
    %v596 = vrcp.pop %v529
    %v597 = vmul.f32 %v529, %v596
    %v598 = vsub.f32 1.0, %v597
    %v599 = vmul.f32 %v596, %v598
    %v600 = vadd.f32 %v596, %v599
    %vm601 = vweird.f32 %v529
    %vm602 = vweird.f32 %v596
    %vm603 = vmor %vm601, %vm602
    %v604 = vsel %vm603, %v596, %v600
    %v605 = vand.u32 2147483647, %v529
    %vm606 = vcmp.eq.f32.partialorder %v605, 8.507059e+37
    %v607 = vand.u32 %v529, 2147483648
    %v608 = vor.u32 1.1754944e-38, %v607
    %v609 = vsel %vm606, %v608, %v604
    %v610 = vrcp.pop %v532
    %v611 = vmul.f32 %v532, %v610
    %v612 = vsub.f32 1.0, %v611
    %v613 = vmul.f32 %v610, %v612
    %v614 = vadd.f32 %v610, %v613
    %vm615 = vweird.f32 %v532
    %vm616 = vweird.f32 %v610
    %vm617 = vmor %vm615, %vm616
    %v618 = vsel %vm617, %v610, %v614
    %v619 = vand.u32 2147483647, %v532
    %vm620 = vcmp.eq.f32.partialorder %v619, 8.507059e+37
    %v621 = vand.u32 %v532, 2147483648
    %v622 = vor.u32 1.1754944e-38, %v621
    %v623 = vsel %vm620, %v622, %v618
    %v624 = vrcp.pop %v535
    %v625 = vmul.f32 %v535, %v624
    %v626 = vsub.f32 1.0, %v625
    %v627 = vmul.f32 %v624, %v626
    %v628 = vadd.f32 %v624, %v627
    %vm629 = vweird.f32 %v535
    %vm630 = vweird.f32 %v624
    %vm631 = vmor %vm629, %vm630
    %v632 = vsel %vm631, %v624, %v628
    %v633 = vand.u32 2147483647, %v535
    %vm634 = vcmp.eq.f32.partialorder %v633, 8.507059e+37
    %v635 = vand.u32 %v535, 2147483648
    %v636 = vor.u32 1.1754944e-38, %v635
    %v637 = vsel %vm634, %v636, %v632
    %v638 = vrcp.pop %v538
    %v639 = vmul.f32 %v538, %v638
    %v640 = vsub.f32 1.0, %v639
    %v641 = vmul.f32 %v638, %v640
    %v642 = vadd.f32 %v638, %v641
    %vm643 = vweird.f32 %v538
    %vm644 = vweird.f32 %v638
    %vm645 = vmor %vm643, %vm644
    %v646 = vsel %vm645, %v638, %v642
    %v647 = vand.u32 2147483647, %v538
    %vm648 = vcmp.eq.f32.partialorder %v647, 8.507059e+37
    %v649 = vand.u32 %v538, 2147483648
    %v650 = vor.u32 1.1754944e-38, %v649
    %v651 = vsel %vm648, %v650, %v646
    %v652 = vrcp.pop %v541
    %v653 = vmul.f32 %v541, %v652
    %v654 = vsub.f32 1.0, %v653
    %v655 = vmul.f32 %v652, %v654
    %v656 = vadd.f32 %v652, %v655
    %vm657 = vweird.f32 %v541
    %vm658 = vweird.f32 %v652
    %vm659 = vmor %vm657, %vm658
    %v660 = vsel %vm659, %v652, %v656
    %v661 = vand.u32 2147483647, %v541
    %vm662 = vcmp.eq.f32.partialorder %v661, 8.507059e+37
    %v663 = vand.u32 %v541, 2147483648
    %v664 = vor.u32 1.1754944e-38, %v663
    %v665 = vsel %vm662, %v664, %v660
    %v666 = vrcp.pop %v544
    %v667 = vmul.f32 %v544, %v666
    %v668 = vsub.f32 1.0, %v667
    %v669 = vmul.f32 %v666, %v668
    %v670 = vadd.f32 %v666, %v669
    %vm671 = vweird.f32 %v544
    %vm672 = vweird.f32 %v666
    %vm673 = vmor %vm671, %vm672
    %v674 = vsel %vm673, %v666, %v670
    %v675 = vand.u32 2147483647, %v544
    %vm676 = vcmp.eq.f32.partialorder %v675, 8.507059e+37
    %v677 = vand.u32 %v544, 2147483648
    %v678 = vor.u32 1.1754944e-38, %v677
    %v679 = vsel %vm676, %v678, %v674
    %v680 = vrcp.pop %v547
    %v681 = vmul.f32 %v547, %v680
    %v682 = vsub.f32 1.0, %v681
    %v683 = vmul.f32 %v680, %v682
    %v684 = vadd.f32 %v680, %v683
    %vm685 = vweird.f32 %v547
    %vm686 = vweird.f32 %v680
    %vm687 = vmor %vm685, %vm686
    %v688 = vsel %vm687, %v680, %v684
    %v689 = vand.u32 2147483647, %v547
    %vm690 = vcmp.eq.f32.partialorder %v689, 8.507059e+37
    %v691 = vand.u32 %v547, 2147483648
    %v692 = vor.u32 1.1754944e-38, %v691
    %v693 = vsel %vm690, %v692, %v688
    %v694 = vrcp.pop %v550
    %v695 = vmul.f32 %v550, %v694
    %v696 = vsub.f32 1.0, %v695
    %v697 = vmul.f32 %v694, %v696
    %v698 = vadd.f32 %v694, %v697
    %vm699 = vweird.f32 %v550
    %vm700 = vweird.f32 %v694
    %vm701 = vmor %vm699, %vm700
    %v702 = vsel %vm701, %v694, %v698
    %v703 = vand.u32 2147483647, %v550
    %vm704 = vcmp.eq.f32.partialorder %v703, 8.507059e+37
    %v705 = vand.u32 %v550, 2147483648
    %v706 = vor.u32 1.1754944e-38, %v705
    %v707 = vsel %vm704, %v706, %v702
    %v708 = vrcp.pop %v553
    %v709 = vmul.f32 %v553, %v708
    %v710 = vsub.f32 1.0, %v709
    %v711 = vmul.f32 %v708, %v710
    %v712 = vadd.f32 %v708, %v711
    %vm713 = vweird.f32 %v553
    %vm714 = vweird.f32 %v708
    %vm715 = vmor %vm713, %vm714
    %v716 = vsel %vm715, %v708, %v712
    %v717 = vand.u32 2147483647, %v553
    %vm718 = vcmp.eq.f32.partialorder %v717, 8.507059e+37
    %v719 = vand.u32 %v553, 2147483648
    %v720 = vor.u32 1.1754944e-38, %v719
    %v721 = vsel %vm718, %v720, %v716
    %v722 = vmul.f32 %v495, %v567
    %v723 = vmul.f32 %v497, %v581
    %v724 = vmul.f32 %v499, %v595
    %v725 = vmul.f32 %v501, %v609
    %v726 = vmul.f32 %v503, %v623
    %v727 = vmul.f32 %v505, %v637
    %v728 = vmul.f32 %v507, %v651
    %v729 = vmul.f32 %v509, %v665
    %v730 = vmul.f32 %v511, %v679
    %v731 = vmul.f32 %v513, %v693
    %v732 = vmul.f32 %v515, %v707
    %v733 = vmul.f32 %v517, %v721
    %734 = vrot.lane.b32.xlu0 %v140, 32
    %v735 = vpop.permute.xlu0 %734
    %736 = vrot.lane.b32.xlu0 %v143, 32
    %v737 = vpop.permute.xlu0 %736
    %v741 = vsel %vm445, %v722, 0
    %v744 = vsel %vm445, %v723, 0
    %746 = vmatpush.msra.mxu0 0.0
    %747 = vmatpush.msra.mxu0 0.0
    %748 = vmatpush.msra.mxu0 0.0
    %749 = vmatpush.msra.mxu0 0.0
    %750 = vmatpush.msra.mxu0 0.0
    %751 = vmatpush.msra.mxu0 0.0
    %752 = vmatpush.msra.mxu0 0.0
    %753 = vmatpush.msra.mxu0 0.0
    %754 = vmatpush.msra.mxu0 0.0
    %755 = vmatpush.msra.mxu0 0.0
    %756 = vmatpush.msra.mxu0 0.0
    %757 = vmatpush.msra.mxu0 0.0
    %758 = vmatpush.msra.mxu0 0.0
    %759 = vmatpush.msra.mxu0 0.0
    %760 = vmatpush.msra.mxu0 %v737
    %761 = vmatpush.msra.mxu0 %v735
    %762 = vmatmul.f32.gmra.mxu0 %v741
    %v763 = vpop.f32.mrf.mxu0
    %v764 = vadd.f32 0.0, %v763
    %765 = vmatmul.f32.gmra.mxu0 %v744
    %v766 = vpop.f32.mrf.mxu0
    %v767 = vadd.f32 0.0, %v766
    %768 = vdwg.mxu0
    %769 = vrot.lane.b32.xlu0 %v171, 32
    %v770 = vpop.permute.xlu0 %769
    %771 = vrot.lane.b32.xlu0 %v173, 32
    %v772 = vpop.permute.xlu0 %771
    %v776 = vsel %vm445, %v724, 0
    %v779 = vsel %vm445, %v725, 0
    %781 = vmatpush.msra.mxu0 0.0
    %782 = vmatpush.msra.mxu0 0.0
    %783 = vmatpush.msra.mxu0 0.0
    %784 = vmatpush.msra.mxu0 0.0
    %785 = vmatpush.msra.mxu0 0.0
    %786 = vmatpush.msra.mxu0 0.0
    %787 = vmatpush.msra.mxu0 0.0
    %788 = vmatpush.msra.mxu0 0.0
    %789 = vmatpush.msra.mxu0 0.0
    %790 = vmatpush.msra.mxu0 0.0
    %791 = vmatpush.msra.mxu0 0.0
    %792 = vmatpush.msra.mxu0 0.0
    %793 = vmatpush.msra.mxu0 0.0
    %794 = vmatpush.msra.mxu0 0.0
    %795 = vmatpush.msra.mxu0 %v772
    %796 = vmatpush.msra.mxu0 %v770
    %797 = vmatmul.f32.gmra.mxu0 %v776
    %v798 = vpop.f32.mrf.mxu0
    %v799 = vadd.f32 0.0, %v798
    %800 = vmatmul.f32.gmra.mxu0 %v779
    %v801 = vpop.f32.mrf.mxu0
    %v802 = vadd.f32 0.0, %v801
    %803 = vdwg.mxu0
    %804 = vrot.lane.b32.xlu0 %v177, 32
    %v805 = vpop.permute.xlu0 %804
    %806 = vrot.lane.b32.xlu0 %v179, 32
    %v807 = vpop.permute.xlu0 %806
    %v811 = vsel %vm445, %v726, 0
    %v814 = vsel %vm445, %v727, 0
    %816 = vmatpush.msra.mxu0 0.0
    %817 = vmatpush.msra.mxu0 0.0
    %818 = vmatpush.msra.mxu0 0.0
    %819 = vmatpush.msra.mxu0 0.0
    %820 = vmatpush.msra.mxu0 0.0
    %821 = vmatpush.msra.mxu0 0.0
    %822 = vmatpush.msra.mxu0 0.0
    %823 = vmatpush.msra.mxu0 0.0
    %824 = vmatpush.msra.mxu0 0.0
    %825 = vmatpush.msra.mxu0 0.0
    %826 = vmatpush.msra.mxu0 0.0
    %827 = vmatpush.msra.mxu0 0.0
    %828 = vmatpush.msra.mxu0 0.0
    %829 = vmatpush.msra.mxu0 0.0
    %830 = vmatpush.msra.mxu0 %v807
    %831 = vmatpush.msra.mxu0 %v805
    %832 = vmatmul.f32.gmra.mxu0 %v811
    %v833 = vpop.f32.mrf.mxu0
    %v834 = vadd.f32 0.0, %v833
    %835 = vmatmul.f32.gmra.mxu0 %v814
    %v836 = vpop.f32.mrf.mxu0
    %v837 = vadd.f32 0.0, %v836
    %838 = vdwg.mxu0
    %839 = vrot.lane.b32.xlu0 %v183, 32
    %v840 = vpop.permute.xlu0 %839
    %841 = vrot.lane.b32.xlu0 %v185, 32
    %v842 = vpop.permute.xlu0 %841
    %v846 = vsel %vm445, %v728, 0
    %v849 = vsel %vm445, %v729, 0
    %851 = vmatpush.msra.mxu0 0.0
    %852 = vmatpush.msra.mxu0 0.0
    %853 = vmatpush.msra.mxu0 0.0
    %854 = vmatpush.msra.mxu0 0.0
    %855 = vmatpush.msra.mxu0 0.0
    %856 = vmatpush.msra.mxu0 0.0
    %857 = vmatpush.msra.mxu0 0.0
    %858 = vmatpush.msra.mxu0 0.0
    %859 = vmatpush.msra.mxu0 0.0
    %860 = vmatpush.msra.mxu0 0.0
    %861 = vmatpush.msra.mxu0 0.0
    %862 = vmatpush.msra.mxu0 0.0
    %863 = vmatpush.msra.mxu0 0.0
    %864 = vmatpush.msra.mxu0 0.0
    %865 = vmatpush.msra.mxu0 %v842
    %866 = vmatpush.msra.mxu0 %v840
    %867 = vmatmul.f32.gmra.mxu0 %v846
    %v868 = vpop.f32.mrf.mxu0
    %v869 = vadd.f32 0.0, %v868
    %870 = vmatmul.f32.gmra.mxu0 %v849
    %v871 = vpop.f32.mrf.mxu0
    %v872 = vadd.f32 0.0, %v871
    %873 = vdwg.mxu0
    %874 = vrot.lane.b32.xlu0 %v215, 32
    %v875 = vpop.permute.xlu0 %874
    %876 = vrot.lane.b32.xlu0 %v217, 32
    %v877 = vpop.permute.xlu0 %876
    %v881 = vsel %vm445, %v730, 0
    %v884 = vsel %vm445, %v731, 0
    %886 = vmatpush.msra.mxu0 0.0
    %887 = vmatpush.msra.mxu0 0.0
    %888 = vmatpush.msra.mxu0 0.0
    %889 = vmatpush.msra.mxu0 0.0
    %890 = vmatpush.msra.mxu0 0.0
    %891 = vmatpush.msra.mxu0 0.0
    %892 = vmatpush.msra.mxu0 0.0
    %893 = vmatpush.msra.mxu0 0.0
    %894 = vmatpush.msra.mxu0 0.0
    %895 = vmatpush.msra.mxu0 0.0
    %896 = vmatpush.msra.mxu0 0.0
    %897 = vmatpush.msra.mxu0 0.0
    %898 = vmatpush.msra.mxu0 0.0
    %899 = vmatpush.msra.mxu0 0.0
    %900 = vmatpush.msra.mxu0 %v877
    %901 = vmatpush.msra.mxu0 %v875
    %902 = vmatmul.f32.gmra.mxu0 %v881
    %v903 = vpop.f32.mrf.mxu0
    %v904 = vadd.f32 0.0, %v903
    %905 = vmatmul.f32.gmra.mxu0 %v884
    %v906 = vpop.f32.mrf.mxu0
    %v907 = vadd.f32 0.0, %v906
    %908 = vdwg.mxu0
    %909 = vrot.lane.b32.xlu0 %v219, 32
    %v910 = vpop.permute.xlu0 %909
    %911 = vrot.lane.b32.xlu0 %v221, 32
    %v912 = vpop.permute.xlu0 %911
    %v916 = vsel %vm445, %v732, 0
    %v919 = vsel %vm445, %v733, 0
    %921 = vmatpush.msra.mxu0 0.0
    %922 = vmatpush.msra.mxu0 0.0
    %923 = vmatpush.msra.mxu0 0.0
    %924 = vmatpush.msra.mxu0 0.0
    %925 = vmatpush.msra.mxu0 0.0
    %926 = vmatpush.msra.mxu0 0.0
    %927 = vmatpush.msra.mxu0 0.0
    %928 = vmatpush.msra.mxu0 0.0
    %929 = vmatpush.msra.mxu0 0.0
    %930 = vmatpush.msra.mxu0 0.0
    %931 = vmatpush.msra.mxu0 0.0
    %932 = vmatpush.msra.mxu0 0.0
    %933 = vmatpush.msra.mxu0 0.0
    %934 = vmatpush.msra.mxu0 0.0
    %935 = vmatpush.msra.mxu0 %v912
    %936 = vmatpush.msra.mxu0 %v910
    %937 = vmatmul.f32.gmra.mxu0 %v916
    %v938 = vpop.f32.mrf.mxu0
    %v939 = vadd.f32 0.0, %v938
    %940 = vmatmul.f32.gmra.mxu0 %v919
    %v941 = vpop.f32.mrf.mxu0
    %v942 = vadd.f32 0.0, %v941
    %943 = vdwg.mxu0
    %v944 = vld [vmem:[%s3] sm:$0xff]
    %v945 = vld [vmem:[%s3 + $0x8] sm:$0xff]
    %v946 = vld [vmem:[%s3 + $0x10] sm:$0xff]
    %v947 = vld [vmem:[%s3 + $0x18] sm:$0xff]
    %v948 = vld [vmem:[%s3 + $0x20] sm:$0xff]
    %v949 = vld [vmem:[%s3 + $0x28] sm:$0xff]
    %v951 = vsel %vm226, %v764, 0
    %v954 = vsel %vm226, %v767, 0
    %956 = vmatpush.msra.mxu0 0.0
    %957 = vmatpush.msra.mxu0 0.0
    %958 = vmatpush.msra.mxu0 0.0
    %959 = vmatpush.msra.mxu0 0.0
    %960 = vmatpush.msra.mxu0 0.0
    %961 = vmatpush.msra.mxu0 0.0
    %962 = vmatpush.msra.mxu0 0.0
    %963 = vmatpush.msra.mxu0 0.0
    %964 = vmatpush.msra.mxu0 0.0
    %965 = vmatpush.msra.mxu0 0.0
    %966 = vmatpush.msra.mxu0 0.0
    %967 = vmatpush.msra.mxu0 0.0
    %968 = vmatpush.msra.mxu0 0.0
    %969 = vmatpush.msra.mxu0 0.0
    %970 = vmatpush.msra.mxu0 0.0
    %971 = vmatpush.msra.mxu0 %v944
    %972 = vmatmul.f32.gmra.mxu0 %v951
    %v973 = vpop.f32.mrf.mxu0
    %v974 = vadd.f32 0.0, %v973
    %975 = vmatmul.f32.gmra.mxu0 %v954
    %v976 = vpop.f32.mrf.mxu0
    %v977 = vadd.f32 0.0, %v976
    %978 = vdwg.mxu0
    %v980 = vsel %vm226, %v799, 0
    %v983 = vsel %vm226, %v802, 0
    %985 = vmatpush.msra.mxu0 0.0
    %986 = vmatpush.msra.mxu0 0.0
    %987 = vmatpush.msra.mxu0 0.0
    %988 = vmatpush.msra.mxu0 0.0
    %989 = vmatpush.msra.mxu0 0.0
    %990 = vmatpush.msra.mxu0 0.0
    %991 = vmatpush.msra.mxu0 0.0
    %992 = vmatpush.msra.mxu0 0.0
    %993 = vmatpush.msra.mxu0 0.0
    %994 = vmatpush.msra.mxu0 0.0
    %995 = vmatpush.msra.mxu0 0.0
    %996 = vmatpush.msra.mxu0 0.0
    %997 = vmatpush.msra.mxu0 0.0
    %998 = vmatpush.msra.mxu0 0.0
    %999 = vmatpush.msra.mxu0 0.0
    %1000 = vmatpush.msra.mxu0 %v945
    %1001 = vmatmul.f32.gmra.mxu0 %v980
    %v1002 = vpop.f32.mrf.mxu0
    %v1003 = vadd.f32 0.0, %v1002
    %1004 = vmatmul.f32.gmra.mxu0 %v983
    %v1005 = vpop.f32.mrf.mxu0
    %v1006 = vadd.f32 0.0, %v1005
    %1007 = vdwg.mxu0
    %v1009 = vsel %vm226, %v834, 0
    %v1012 = vsel %vm226, %v837, 0
    %1014 = vmatpush.msra.mxu0 0.0
    %1015 = vmatpush.msra.mxu0 0.0
    %1016 = vmatpush.msra.mxu0 0.0
    %1017 = vmatpush.msra.mxu0 0.0
    %1018 = vmatpush.msra.mxu0 0.0
    %1019 = vmatpush.msra.mxu0 0.0
    %1020 = vmatpush.msra.mxu0 0.0
    %1021 = vmatpush.msra.mxu0 0.0
    %1022 = vmatpush.msra.mxu0 0.0
    %1023 = vmatpush.msra.mxu0 0.0
    %1024 = vmatpush.msra.mxu0 0.0
    %1025 = vmatpush.msra.mxu0 0.0
    %1026 = vmatpush.msra.mxu0 0.0
    %1027 = vmatpush.msra.mxu0 0.0
    %1028 = vmatpush.msra.mxu0 0.0
    %1029 = vmatpush.msra.mxu0 %v946
    %1030 = vmatmul.f32.gmra.mxu0 %v1009
    %v1031 = vpop.f32.mrf.mxu0
    %v1032 = vadd.f32 0.0, %v1031
    %1033 = vmatmul.f32.gmra.mxu0 %v1012
    %v1034 = vpop.f32.mrf.mxu0
    %v1035 = vadd.f32 0.0, %v1034
    %1036 = vdwg.mxu0
    %v1038 = vsel %vm226, %v869, 0
    %v1041 = vsel %vm226, %v872, 0
    %1043 = vmatpush.msra.mxu0 0.0
    %1044 = vmatpush.msra.mxu0 0.0
    %1045 = vmatpush.msra.mxu0 0.0
    %1046 = vmatpush.msra.mxu0 0.0
    %1047 = vmatpush.msra.mxu0 0.0
    %1048 = vmatpush.msra.mxu0 0.0
    %1049 = vmatpush.msra.mxu0 0.0
    %1050 = vmatpush.msra.mxu0 0.0
    %1051 = vmatpush.msra.mxu0 0.0
    %1052 = vmatpush.msra.mxu0 0.0
    %1053 = vmatpush.msra.mxu0 0.0
    %1054 = vmatpush.msra.mxu0 0.0
    %1055 = vmatpush.msra.mxu0 0.0
    %1056 = vmatpush.msra.mxu0 0.0
    %1057 = vmatpush.msra.mxu0 0.0
    %1058 = vmatpush.msra.mxu0 %v947
    %1059 = vmatmul.f32.gmra.mxu0 %v1038
    %v1060 = vpop.f32.mrf.mxu0
    %v1061 = vadd.f32 0.0, %v1060
    %1062 = vmatmul.f32.gmra.mxu0 %v1041
    %v1063 = vpop.f32.mrf.mxu0
    %v1064 = vadd.f32 0.0, %v1063
    %1065 = vdwg.mxu0
    %v1067 = vsel %vm226, %v904, 0
    %v1070 = vsel %vm226, %v907, 0
    %1072 = vmatpush.msra.mxu0 0.0
    %1073 = vmatpush.msra.mxu0 0.0
    %1074 = vmatpush.msra.mxu0 0.0
    %1075 = vmatpush.msra.mxu0 0.0
    %1076 = vmatpush.msra.mxu0 0.0
    %1077 = vmatpush.msra.mxu0 0.0
    %1078 = vmatpush.msra.mxu0 0.0
    %1079 = vmatpush.msra.mxu0 0.0
    %1080 = vmatpush.msra.mxu0 0.0
    %1081 = vmatpush.msra.mxu0 0.0
    %1082 = vmatpush.msra.mxu0 0.0
    %1083 = vmatpush.msra.mxu0 0.0
    %1084 = vmatpush.msra.mxu0 0.0
    %1085 = vmatpush.msra.mxu0 0.0
    %1086 = vmatpush.msra.mxu0 0.0
    %1087 = vmatpush.msra.mxu0 %v948
    %1088 = vmatmul.f32.gmra.mxu0 %v1067
    %v1089 = vpop.f32.mrf.mxu0
    %v1090 = vadd.f32 0.0, %v1089
    %1091 = vmatmul.f32.gmra.mxu0 %v1070
    %v1092 = vpop.f32.mrf.mxu0
    %v1093 = vadd.f32 0.0, %v1092
    %1094 = vdwg.mxu0
    %v1096 = vsel %vm226, %v939, 0
    %v1099 = vsel %vm226, %v942, 0
    %1101 = vmatpush.msra.mxu0 0.0
    %1102 = vmatpush.msra.mxu0 0.0
    %1103 = vmatpush.msra.mxu0 0.0
    %1104 = vmatpush.msra.mxu0 0.0
    %1105 = vmatpush.msra.mxu0 0.0
    %1106 = vmatpush.msra.mxu0 0.0
    %1107 = vmatpush.msra.mxu0 0.0
    %1108 = vmatpush.msra.mxu0 0.0
    %1109 = vmatpush.msra.mxu0 0.0
    %1110 = vmatpush.msra.mxu0 0.0
    %1111 = vmatpush.msra.mxu0 0.0
    %1112 = vmatpush.msra.mxu0 0.0
    %1113 = vmatpush.msra.mxu0 0.0
    %1114 = vmatpush.msra.mxu0 0.0
    %1115 = vmatpush.msra.mxu0 0.0
    %1116 = vmatpush.msra.mxu0 %v949
    %1117 = vmatmul.f32.gmra.mxu0 %v1096
    %v1118 = vpop.f32.mrf.mxu0
    %v1119 = vadd.f32 0.0, %v1118
    %1120 = vmatmul.f32.gmra.mxu0 %v1099
    %v1121 = vpop.f32.mrf.mxu0
    %v1122 = vadd.f32 0.0, %v1121
    %1123 = vdwg.mxu0
    %v1124 = vsel %vm46, %v974, 0.0
    %v1125 = vsel %vm46, %v1003, 0.0
    %v1126 = vadd.f32 %v1124, %v1125
    %v1127 = vsel %vm46, %v1032, 0.0
    %v1128 = vadd.f32 %v1126, %v1127
    %v1129 = vsel %vm46, %v1061, 0.0
    %v1130 = vadd.f32 %v1128, %v1129
    %v1131 = vsel %vm46, %v1090, 0.0
    %v1132 = vadd.f32 %v1130, %v1131
    %v1133 = vsel %vm46, %v1119, 0.0
    %v1134 = vadd.f32 %v1132, %v1133
    %v1135 = vsel %vm46, %v977, 0.0
    %v1136 = vsel %vm46, %v1006, 0.0
    %v1137 = vadd.f32 %v1135, %v1136
    %v1138 = vsel %vm46, %v1035, 0.0
    %v1139 = vadd.f32 %v1137, %v1138
    %v1140 = vsel %vm46, %v1064, 0.0
    %v1141 = vadd.f32 %v1139, %v1140
    %v1142 = vsel %vm46, %v1093, 0.0
    %v1143 = vadd.f32 %v1141, %v1142
    %v1144 = vsel %vm46, %v1122, 0.0
    %v1145 = vadd.f32 %v1143, %v1144
    %v1146 = vperm.slane %v42, 4
    %v1147 = vadd.f32 %v1134, %v1146
    %v1148 = vadd.f32 %v1145, %v1146
    %v1149 = vadd.f32 %v40, %v1147
    %v1150 = vadd.f32 %v41, %v1148
    %v1151 = vsel %vm46, %v1149, 0.0
    %1152 = vadd.xlane.f32.xlu0 %v1151
    %v1153 = vpop.xlane.xlu0 %1152
    %v1154 = vsel %vm46, %v1150, 0.0
    %1155 = vadd.xlane.f32.xlu0 %v1154
    %v1156 = vpop.xlane.xlu0 %1155
    %v1157 = vmul.f32 %v1153, %v59
    %v1158 = vmul.f32 %v1156, %v59
    %v1159 = vsub.f32 %v1149, %v1157
    %v1160 = vsub.f32 %v1150, %v1158
    %v1161 = vmul.f32 %v1159, %v1159
    %v1162 = vmul.f32 %v1160, %v1160
    %v1163 = vsel %vm46, %v1161, 0.0
    %1164 = vadd.xlane.f32.xlu0 %v1163
    %v1165 = vpop.xlane.xlu0 %1164
    %v1166 = vsel %vm46, %v1162, 0.0
    %1167 = vadd.xlane.f32.xlu0 %v1166
    %v1168 = vpop.xlane.xlu0 %1167
    %v1169 = vmul.f32 %v1165, %v59
    %v1170 = vmul.f32 %v1168, %v59
    %v1171 = vadd.f32 %v1169, 1e-05
    %v1172 = vadd.f32 %v1170, 1e-05
    %v1173 = vrsqrt.pop %v1171
    %v1174 = vmul.f32 %v1173, %v1171
    %v1175 = vmul.f32 %v1174, %v1173
    %v1176 = vmul.f32 0.5, %v1175
    %v1177 = vsub.f32 1.5, %v1176
    %v1178 = vmul.f32 %v1173, %v1177
    %vm1179 = vweird.f32 %v1171
    %vm1180 = vweird.f32 %v1173
    %vm1181 = vmor %vm1179, %vm1180
    %v1182 = vsel %vm1181, %v1173, %v1178
    %v1183 = vrsqrt.pop %v1172
    %v1184 = vmul.f32 %v1183, %v1172
    %v1185 = vmul.f32 %v1184, %v1183
    %v1186 = vmul.f32 0.5, %v1185
    %v1187 = vsub.f32 1.5, %v1186
    %v1188 = vmul.f32 %v1183, %v1187
    %vm1189 = vweird.f32 %v1172
    %vm1190 = vweird.f32 %v1183
    %vm1191 = vmor %vm1189, %vm1190
    %v1192 = vsel %vm1191, %v1183, %v1188
    %v1193 = vmul.f32 %v1159, %v1182
    %v1194 = vmul.f32 %v1160, %v1192
    %v1195 = vperm.slane %v42, 2
    %v1196 = vmul.f32 %v1193, %v1195
    %v1197 = vmul.f32 %v1194, %v1195
    %v1198 = vperm.slane %v42, 3
    %v1199 = vadd.f32 %v1196, %v1198
    %v1200 = vadd.f32 %v1197, %v1198
    %v1201 = vld [vmem:[%s4] sm:$0xff]
    %v1202 = vld [vmem:[%s4 + $0x8] sm:$0xff]
    %v1203 = vld [vmem:[%s4 + $0x10] sm:$0xff]
    %v1204 = vld [vmem:[%s4 + $0x18] sm:$0xff]
    %v1205 = vld [vmem:[%s4 + $0x20] sm:$0xff]
    %v1206 = vld [vmem:[%s4 + $0x28] sm:$0xff]
    %v1207 = vld [vmem:[%s4 + $0x30] sm:$0xff]
    %v1208 = vld [vmem:[%s4 + $0x38] sm:$0xff]
    %v1209 = vld [vmem:[%s4 + $0x40] sm:$0xff]
    %v1210 = vld [vmem:[%s4 + $0x48] sm:$0xff]
    %v1211 = vld [vmem:[%s4 + $0x50] sm:$0xff]
    %v1212 = vld [vmem:[%s4 + $0x58] sm:$0xff]
    %v1213 = vperm.slane %v42, 5
    %v1214 = vperm.slane %v43, 5
    %v1216 = vsel %vm46, %v1199, 0
    %v1219 = vsel %vm46, %v1200, 0
    %1221 = vmatpush.msra.mxu0 0.0
    %1222 = vmatpush.msra.mxu0 0.0
    %1223 = vmatpush.msra.mxu0 0.0
    %1224 = vmatpush.msra.mxu0 0.0
    %1225 = vmatpush.msra.mxu0 0.0
    %1226 = vmatpush.msra.mxu0 0.0
    %1227 = vmatpush.msra.mxu0 0.0
    %1228 = vmatpush.msra.mxu0 0.0
    %1229 = vmatpush.msra.mxu0 0.0
    %1230 = vmatpush.msra.mxu0 0.0
    %1231 = vmatpush.msra.mxu0 %v1211
    %1232 = vmatpush.msra.mxu0 %v1209
    %1233 = vmatpush.msra.mxu0 %v1207
    %1234 = vmatpush.msra.mxu0 %v1205
    %1235 = vmatpush.msra.mxu0 %v1203
    %1236 = vmatpush.msra.mxu0 %v1201
    %1237 = vmatmul.f32.gmra.mxu0 %v1216
    %v1238 = vpop.f32.mrf.mxu0
    %v1239 = vadd.f32 %v1213, %v1238
    %1240 = vmatmul.f32.gmra.mxu0 %v1219
    %v1241 = vpop.f32.mrf.mxu0
    %v1242 = vadd.f32 %v1213, %v1241
    %1243 = vdwg.mxu0
    %1244 = vmatpush.msra.mxu0 0.0
    %1245 = vmatpush.msra.mxu0 0.0
    %1246 = vmatpush.msra.mxu0 0.0
    %1247 = vmatpush.msra.mxu0 0.0
    %1248 = vmatpush.msra.mxu0 0.0
    %1249 = vmatpush.msra.mxu0 0.0
    %1250 = vmatpush.msra.mxu0 0.0
    %1251 = vmatpush.msra.mxu0 0.0
    %1252 = vmatpush.msra.mxu0 0.0
    %1253 = vmatpush.msra.mxu0 0.0
    %1254 = vmatpush.msra.mxu0 %v1212
    %1255 = vmatpush.msra.mxu0 %v1210
    %1256 = vmatpush.msra.mxu0 %v1208
    %1257 = vmatpush.msra.mxu0 %v1206
    %1258 = vmatpush.msra.mxu0 %v1204
    %1259 = vmatpush.msra.mxu0 %v1202
    %1260 = vmatmul.f32.gmra.mxu0 %v1216
    %v1261 = vpop.f32.mrf.mxu0
    %v1262 = vadd.f32 %v1214, %v1261
    %1263 = vmatmul.f32.gmra.mxu0 %v1219
    %v1264 = vpop.f32.mrf.mxu0
    %v1265 = vadd.f32 %v1214, %v1264
    %1266 = vdwg.mxu0
    %v1267 = vmax.f32 %v1239, 0.0
    %v1268 = vmax.f32 %v1262, 0.0
    %v1269 = vmax.f32 %v1242, 0.0
    %v1270 = vmax.f32 %v1265, 0.0
    %v1271 = vld [vmem:[%s5] sm:$0xff]
    %v1272 = vld [vmem:[%s5 + $0x8] sm:$0xff]
    %v1273 = vld [vmem:[%s5 + $0x10] sm:$0xff]
    %v1274 = vld [vmem:[%s5 + $0x18] sm:$0xff]
    %v1275 = vld [vmem:[%s5 + $0x20] sm:$0xff]
    %v1276 = vld [vmem:[%s5 + $0x28] sm:$0xff]
    %v1277 = vld [vmem:[%s5 + $0x30] sm:$0xff]
    %v1278 = vld [vmem:[%s5 + $0x38] sm:$0xff]
    %v1279 = vld [vmem:[%s5 + $0x40] sm:$0xff]
    %v1280 = vld [vmem:[%s5 + $0x48] sm:$0xff]
    %v1281 = vld [vmem:[%s5 + $0x50] sm:$0xff]
    %v1282 = vld [vmem:[%s5 + $0x58] sm:$0xff]
    %v1283 = vld [vmem:[%s5 + $0x60] sm:$0xff]
    %v1284 = vld [vmem:[%s5 + $0x68] sm:$0xff]
    %v1285 = vld [vmem:[%s5 + $0x70] sm:$0xff]
    %v1286 = vld [vmem:[%s5 + $0x78] sm:$0xff]
    %v1287 = vld [vmem:[%s5 + $0x80] sm:$0xff]
    %v1288 = vld [vmem:[%s5 + $0x88] sm:$0xff]
    %v1289 = vld [vmem:[%s5 + $0x90] sm:$0xff]
    %v1290 = vld [vmem:[%s5 + $0x98] sm:$0xff]
    %v1291 = vld [vmem:[%s5 + $0xa0] sm:$0xff]
    %v1292 = vld [vmem:[%s5 + $0xa8] sm:$0xff]
    %v1293 = vld [vmem:[%s5 + $0xb0] sm:$0xff]
    %v1294 = vld [vmem:[%s5 + $0xb8] sm:$0xff]
    %v1295 = vperm.slane %v42, 6
    %vm1296 = vcmask 523264
    %v1298 = vsel %vm1296, %v1268, 0
    %v1301 = vsel %vm1296, %v1270, 0
    %1303 = vmatpush.msra.mxu0 %v1286
    %1304 = vmatpush.msra.mxu0 %v1285
    %1305 = vmatpush.msra.mxu0 %v1284
    %1306 = vmatpush.msra.mxu0 %v1283
    %1307 = vmatpush.msra.mxu0 %v1282
    %1308 = vmatpush.msra.mxu0 %v1281
    %1309 = vmatpush.msra.mxu0 %v1280
    %1310 = vmatpush.msra.mxu0 %v1279
    %1311 = vmatpush.msra.mxu0 %v1278
    %1312 = vmatpush.msra.mxu0 %v1277
    %1313 = vmatpush.msra.mxu0 %v1276
    %1314 = vmatpush.msra.mxu0 %v1275
    %1315 = vmatpush.msra.mxu0 %v1274
    %1316 = vmatpush.msra.mxu0 %v1273
    %1317 = vmatpush.msra.mxu0 %v1272
    %1318 = vmatpush.msra.mxu0 %v1271
    %1319 = vmatmul.f32.gmra.mxu0 %v1267
    %v1320 = vpop.f32.mrf.mxu0
    %v1321 = vadd.f32 %v1295, %v1320
    %1322 = vmatmul.f32.gmra.mxu0 %v1269
    %v1323 = vpop.f32.mrf.mxu0
    %v1324 = vadd.f32 %v1295, %v1323
    %1325 = vdwg.mxu0
    %1326 = vmatpush.msra.mxu0 0.0
    %1327 = vmatpush.msra.mxu0 0.0
    %1328 = vmatpush.msra.mxu0 0.0
    %1329 = vmatpush.msra.mxu0 0.0
    %1330 = vmatpush.msra.mxu0 0.0
    %1331 = vmatpush.msra.mxu0 0.0
    %1332 = vmatpush.msra.mxu0 0.0
    %1333 = vmatpush.msra.mxu0 0.0
    %1334 = vmatpush.msra.mxu0 %v1294
    %1335 = vmatpush.msra.mxu0 %v1293
    %1336 = vmatpush.msra.mxu0 %v1292
    %1337 = vmatpush.msra.mxu0 %v1291
    %1338 = vmatpush.msra.mxu0 %v1290
    %1339 = vmatpush.msra.mxu0 %v1289
    %1340 = vmatpush.msra.mxu0 %v1288
    %1341 = vmatpush.msra.mxu0 %v1287
    %1342 = vmatmul.f32.gmra.mxu0 %v1298
    %v1343 = vpop.f32.mrf.mxu0
    %v1344 = vadd.f32 %v1321, %v1343
    %1345 = vmatmul.f32.gmra.mxu0 %v1301
    %v1346 = vpop.f32.mrf.mxu0
    %v1347 = vadd.f32 %v1324, %v1346
    %1348 = vdwg.mxu0
    %v1349 = vadd.f32 %v1149, %v1344
    %v1350 = vadd.f32 %v1150, %v1347
    %v1351 = vsel %vm46, %v1349, 0.0
    %v1352 = vsel %vm46, %v1350, 0.0
    %1353 = vst [vmem:[#allocation5] sm:$0xff] %v1351
    %1354 = vst [vmem:[#allocation5 + $0x8] sm:$0xff] %v1352
    // Predicated region
    $region30: #{tpu_custom_call.1} parent=1 // pred_check
      _
    $region31: #{tpu_custom_call.1} parent=1 // pred_check_branch
      %1356 = sbr.rel (0) target = $region33
    $region32: #{tpu_custom_call.1} parent=1 // pred_region
      %1358 = vsyncadd [#allocation4], 0
      %s1359 = sshll.u32 [#allocation5], 4
      %s1360 = int_to_ptr.vmem [resolvable:$true] %s1359
      %s1361 = sshll.u32 %s6, 4
      %s1362 = int_to_ptr.hbm [resolvable:$true] %s1361
      %1367 = dma.vmem_to_hbm [thread:$0]  %s1360, 256, %s1362, [#allocation4], 128, 128, 8
    $region33: #{tpu_custom_call.1} parent=1 // pred_fallthru
      _
    // Predicated region
    $region34: #{tpu_custom_call.1} parent=1 // pred_check
      _
    $region35: #{tpu_custom_call.1} parent=1 // pred_check_branch
      %1369 = sbr.rel (0) target = $region37
    $region36: #{tpu_custom_call.1} parent=1 // pred_region
      %1371 = dma.done [#allocation4], 256
    $region37: #{tpu_custom_call.1} parent=1 // pred_fallthru
      _
    %1372 = vsyncpa [#allocation3], 1
    %1373 = vsyncpa [#allocation4], 1

</llo_original>
